<compile_context>
chip_gen: v7x
topology: tpu7x:2x2x1
jax: 0.10.0
libtpu: 0.0.40
codegen_flags: <defaults>
</compile_context>

<pallas_src>
import functools

import jax
import jax.numpy as jnp
from jax.experimental import pallas as pl
from jax.experimental.pallas import tpu as pltpu

D_SPLIT = 128                         # feature split point, fixed by the module
_VMEM_BUDGET = 40 * 1024 * 1024       # per-tile working-set budget (portable to v7x's 64 MiB)
_MAX_TABLE_BYTES = 16 * 1024 * 1024   # VMEM-resident node-table ceiling


def l2_kernel(edge_ref, limbs_ref, out_ref, *, n_lig_rows, d_split):
    # edge_ref:  (2, TILE_E) int32          row 0 = ligand row id, row 1 = protein row id
    # limbs_ref: (N_LIMBS, D, N_CAT) bf16   bf16 limbs of [ligand_pad; protein_pad].T
    # out_ref:   (2, TILE_E) f32            row 0 = mu, row 1 = var
    tile_e = edge_ref.shape[1]
    n_limbs, _, n_cat = limbs_ref.shape

    li = edge_ref[0:1, :]                        # (1, TILE_E) ligand row id
    pi = edge_ref[1:2, :] + n_lig_rows           # (1, TILE_E) protein row id in cat

    # Signed one-hot coefficients with E on lanes, node id on sublanes:
    #   coeff[n, e] = +1 if n == li[e], -1 if n == pi[e], else 0   (exact in bf16)
    node_ids = jax.lax.broadcasted_iota(jnp.int32, (n_cat, tile_e), 0)
    coeff = ((node_ids == li).astype(jnp.float32)
             - (node_ids == pi).astype(jnp.float32)).astype(jnp.bfloat16)

    def gathered_diff(rows):
        # diffT[rows, e] = ligand_h[li[e], rows] - protein_h[pi[e], rows]
        # summed over bf16 limbs, accumulated in f32 on the MXU.
        acc = jnp.dot(limbs_ref[0, rows, :], coeff,
                      preferred_element_type=jnp.float32)
        for limb in range(1, n_limbs):
            acc = acc + jnp.dot(limbs_ref[limb, rows, :], coeff,
                                preferred_element_type=jnp.float32)
        return acc                                # (len(rows), TILE_E) f32

    # Split at d_split: each half's reduction fuses right after its dot, so only
    # one (128, TILE_E) f32 diff half is live at a time.  Both reductions run
    # along sublanes (VALU adds + one 8-sublane finish), results are lane rows.
    d_abs = gathered_diff(slice(0, d_split))
    var = jnp.sum(jnp.abs(d_abs), axis=0)         # (TILE_E,)

    d_sq = gathered_diff(slice(d_split, None))
    mu = jnp.sqrt(jnp.sum(d_sq * d_sq, axis=0))   # (TILE_E,)

    out_ref[0, :] = mu
    out_ref[1, :] = var


@functools.partial(jax.jit, static_argnames=("tile_e", "single_buffer_table"))
def _l2_forward_impl(ligand_h, protein_h, edge_index, *, tile_e, single_buffer_table):
    n_lig, D = ligand_h.shape
    n_prot, D2 = protein_h.shape
    if D != D2:
        raise ValueError("ligand_h and protein_h must share the feature dim")
    if D <= D_SPLIT:
        raise ValueError(f"L2 requires feature dim > {D_SPLIT}, got {D}")
    E = edge_index.shape[1]

    dtype = jnp.promote_types(ligand_h.dtype, protein_h.dtype)

    # --- node table: pad rows, concatenate, transpose, split into bf16 limbs ---
    # n_l_pad only has to be a clean offset; the total row count (the matmul
    # contraction dim) is padded to a multiple of 128 for lane-aligned MXU tiles
    # and unmasked iota/compare ops.
    n_l_pad = pl.cdiv(n_lig, 8) * 8
    n_cat = pl.cdiv(n_l_pad + n_prot, 128) * 128

    lig = jnp.pad(ligand_h.astype(dtype), ((0, n_l_pad - n_lig), (0, 0)))
    prot = jnp.pad(protein_h.astype(dtype), ((0, n_cat - n_l_pad - n_prot), (0, 0)))
    catT = jnp.concatenate([lig, prot], axis=0).T            # (D, N_CAT)

    if dtype == jnp.bfloat16:
        limbs = catT[None, :, :]                              # (1, D, N_CAT), exact gather
    else:
        cat32 = catT.astype(jnp.float32)
        hi = cat32.astype(jnp.bfloat16)
        lo = (cat32 - hi.astype(jnp.float32)).astype(jnp.bfloat16)
        limbs = jnp.stack([hi, lo], axis=0)                   # (2, D, N_CAT), >=16-bit table
    n_limbs = limbs.shape[0]

    table_bytes = n_limbs * D * n_cat * 2
    if table_bytes > _MAX_TABLE_BYTES:
        # TODO(synk): add a manual-DMA row-gather fallback for very large node
        # tables instead of the VMEM-resident one-hot MXU gather.
        raise ValueError(
            f"padded node tables ({table_bytes} bytes) are too large to keep "
            "VMEM-resident for the one-hot MXU gather")

    # --- edge-axis tiling -------------------------------------------------------
    e128 = pl.cdiv(max(E, 1), 128) * 128
    tile_e = max(128, (int(tile_e) // 128) * 128)
    tile_e = min(tile_e, e128)
    m = e128 // 128
    if m >= 2:
        # Guarantee >= 2 grid steps so ("parallel",) can use both v7x TensorCores.
        tile_e = min(tile_e, pl.cdiv(m, 2) * 128)

    def footprint(t):
        return (table_bytes                      # single-buffered limb table
                + n_cat * t * (2 + 4)            # bf16 coeff + iota/compare temps
                + D * t * 4                      # f32 diff halves (generous)
                + 2 * (2 * t * 4) * 2)           # double-buffered edge + out tiles

    while tile_e > 128 and footprint(tile_e) > _VMEM_BUDGET:
        tile_e -= 128
    e_pad = pl.cdiv(E, tile_e) * tile_e

    edges = edge_index.astype(jnp.int32)                      # (2, E), lane-dense
    if e_pad != E:
        # Padded edges point at ligand row 0 / protein row 0: finite garbage,
        # sliced off below.
        edges = jnp.pad(edges, ((0, 0), (0, e_pad - E)))

    kernel = functools.partial(l2_kernel, n_lig_rows=n_l_pad, d_split=D_SPLIT)

    cost = pl.CostEstimate(
        flops=2 * e_pad * n_cat * D * n_limbs + 4 * e_pad * D,
        transcendentals=e_pad,
        bytes_accessed=2 * e_pad * 4 + table_bytes + 2 * e_pad * 4,
    )

    if single_buffer_table:
        # Constant index_map: the table block never changes -> one buffer, one DMA.
        table_spec = pl.BlockSpec((n_limbs, D, n_cat), lambda i: (0, 0, 0),
                                  pipeline_mode=pl.Buffered(1))
    else:
        table_spec = pl.BlockSpec((n_limbs, D, n_cat), lambda i: (0, 0, 0))

    vmem_limit = int(min(64 * 1024 * 1024,
                         max(32 * 1024 * 1024, 2 * footprint(tile_e))))

    out = pl.pallas_call(
        kernel,
        out_shape=jax.ShapeDtypeStruct((2, e_pad), jnp.float32),
        grid=(e_pad // tile_e,),
        in_specs=[
            pl.BlockSpec((2, tile_e), lambda i: (0, i)),      # lane-dense edge ids
            table_spec,                                       # whole node table
        ],
        out_specs=pl.BlockSpec((2, tile_e), lambda i: (0, i)),
        compiler_params=pltpu.CompilerParams(
            dimension_semantics=("parallel",),
            vmem_limit_bytes=vmem_limit,
        ),
        cost_estimate=cost,
    )(edges, limbs)

    # (E, 2): column 0 = mu, column 1 = var   (== torch.vstack([mu, var]).T)
    return out[:, :E].T.astype(dtype)


def l2_forward(ligand_h, protein_h, edge_index, tile_e=1024):
    try:
        return _l2_forward_impl(ligand_h, protein_h, edge_index,
                                tile_e=tile_e, single_buffer_table=True)
    except Exception:
        # Fallback for jax versions where pl.Buffered(1) (single-buffered
        # constant block) is not supported by the Mosaic pipeline.
        return _l2_forward_impl(ligand_h, protein_h, edge_index,
                                tile_e=tile_e, single_buffer_table=False)


def l2_reference(ligand_h, protein_h, edge_index):
    diff = (ligand_h.astype(jnp.float32)[edge_index[0]]
            - protein_h.astype(jnp.float32)[edge_index[1]])
    var = jnp.sum(jnp.abs(diff[:, :D_SPLIT]), axis=1)
    mu = jnp.linalg.norm(diff[:, D_SPLIT:], axis=1)
    return jnp.stack([mu, var], axis=1)


if __name__ == "__main__":
    key = jax.random.PRNGKey(0)
    k1, k2, k3, k4, k5, k6 = jax.random.split(key, 6)

    n_lig, n_prot, D = 8, 12, 256      # D = 128 (|.| part) + 128 (L2 part)
    ligand_h = jax.random.normal(k1, (n_lig, D), dtype=jnp.float32)
    protein_h = jax.random.normal(k2, (n_prot, D), dtype=jnp.float32)

    # Case 1: small edge count -> single tile / single grid step.
    E = 16
    edge_index = jnp.stack([
        jax.random.randint(k3, (E,), 0, n_lig),
        jax.random.randint(k4, (E,), 0, n_prot),
    ], axis=0)                          # (2, E)
    out = jax.block_until_ready(l2_forward(ligand_h, protein_h, edge_index))
    ref = l2_reference(ligand_h, protein_h, edge_index)
    assert out.shape == (E, 2), out.shape
    assert jnp.allclose(out, ref, atol=2e-3, rtol=2e-3), (out, ref)

    # Case 2: non-tile-multiple edge count, default tile -> 2 balanced grid
    # steps (exercises the >=2-step megacore split).
    E2 = 300
    edge_index2 = jnp.stack([
        jax.random.randint(k5, (E2,), 0, n_lig),
        jax.random.randint(k6, (E2,), 0, n_prot),
    ], axis=0)
    out2 = jax.block_until_ready(l2_forward(ligand_h, protein_h, edge_index2))
    ref2 = l2_reference(ligand_h, protein_h, edge_index2)
    assert out2.shape == (E2, 2), out2.shape
    assert jnp.allclose(out2, ref2, atol=2e-3, rtol=2e-3), (out2, ref2)

    # Case 3: explicit small tile -> 3 grid steps.
    out3 = jax.block_until_ready(
        l2_forward(ligand_h, protein_h, edge_index2, tile_e=128))
    assert jnp.allclose(out3, ref2, atol=2e-3, rtol=2e-3), (out3, ref2)

    # Case 4: bf16 node tables (single-limb, exact bf16 gather path).
    out4 = jax.block_until_ready(
        l2_forward(ligand_h.astype(jnp.bfloat16),
                   protein_h.astype(jnp.bfloat16), edge_index2))
    ref4 = l2_reference(ligand_h.astype(jnp.bfloat16),
                        protein_h.astype(jnp.bfloat16), edge_index2)
    assert out4.dtype == jnp.bfloat16
    assert jnp.allclose(out4.astype(jnp.float32), ref4, atol=5e-2, rtol=5e-2)

    print("KERNEL_OK")
</pallas_src>

<mosaic_0001>
module attributes {stable_mosaic.version = 11 : i64} {
  func.func @l2_kernel(%arg0: i32, %arg1: memref<2x128xi32, #tpu.memory_space<vmem>>, %arg2: memref<2x256x128xbf16, #tpu.memory_space<vmem>>, %arg3: memref<2x128xf32, #tpu.memory_space<vmem>>) attributes {dimension_semantics = [#tpu.dimension_semantics<parallel>], iteration_bounds = array<i64: 1>, scalar_prefetch = 0 : i64, scratch_operands = 0 : i64, tpu.core_type = #tpu.core_type<tc>, window_params = [{transform_indices = @transform_0, window_bounds = array<i64: 2, 128>}, {pipeline_mode = #tpu.pipeline_mode<synchronous>, transform_indices = @transform_1, window_bounds = array<i64: 2, 256, 128>}, {transform_indices = @transform_2, window_bounds = array<i64: 2, 128>}]} {
    %c0 = arith.constant 0 : index
    %c0_0 = arith.constant 0 : index
    %0 = vector.load %arg1[%c0, %c0_0] : memref<2x128xi32, #tpu.memory_space<vmem>>, vector<1x128xi32>
    %c1 = arith.constant 1 : index
    %c0_1 = arith.constant 0 : index
    %1 = vector.load %arg1[%c1, %c0_1] : memref<2x128xi32, #tpu.memory_space<vmem>>, vector<1x128xi32>
    %c8_i32 = arith.constant 8 : i32
    %2 = vector.broadcast %c8_i32 : i32 to vector<1x128xi32>
    %3 = arith.addi %1, %2 : vector<1x128xi32>
    %4 = tpu.iota {dimensions = array<i32: 0>} : vector<128x128xi32>
    %5 = vector.broadcast %0 : vector<1x128xi32> to vector<128x128xi32>
    %6 = arith.cmpi eq, %4, %5 : vector<128x128xi32>
    %7 = arith.extui %6 : vector<128x128xi1> to vector<128x128xi32>
    %8 = arith.sitofp %7 : vector<128x128xi32> to vector<128x128xf32>
    %9 = vector.broadcast %3 : vector<1x128xi32> to vector<128x128xi32>
    %10 = arith.cmpi eq, %4, %9 : vector<128x128xi32>
    %11 = arith.extui %10 : vector<128x128xi1> to vector<128x128xi32>
    %12 = arith.sitofp %11 : vector<128x128xi32> to vector<128x128xf32>
    %13 = arith.subf %8, %12 : vector<128x128xf32>
    %14 = arith.truncf %13 : vector<128x128xf32> to vector<128x128xbf16>
    %c0_2 = arith.constant 0 : index
    %c0_3 = arith.constant 0 : index
    %c0_4 = arith.constant 0 : index
    %15 = vector.load %arg2[%c0_2, %c0_3, %c0_4] : memref<2x256x128xbf16, #tpu.memory_space<vmem>>, vector<1x128x128xbf16>
    %16 = vector.shape_cast %15 : vector<1x128x128xbf16> to vector<128x128xbf16>
    %cst = arith.constant dense<0.000000e+00> : vector<128x128xf32>
    %17 = tpu.matmul %16, %14, %cst {dimension_numbers = #tpu.dot_dimension_numbers<[1], [0], [0], [1], [0, 0, 1, 1], [], []>} : vector<128x128xbf16>, vector<128x128xbf16>, vector<128x128xf32> -> vector<128x128xf32>
    %c1_5 = arith.constant 1 : index
    %c0_6 = arith.constant 0 : index
    %c0_7 = arith.constant 0 : index
    %18 = vector.load %arg2[%c1_5, %c0_6, %c0_7] : memref<2x256x128xbf16, #tpu.memory_space<vmem>>, vector<1x128x128xbf16>
    %19 = vector.shape_cast %18 : vector<1x128x128xbf16> to vector<128x128xbf16>
    %cst_8 = arith.constant dense<0.000000e+00> : vector<128x128xf32>
    %20 = tpu.matmul %19, %14, %cst_8 {dimension_numbers = #tpu.dot_dimension_numbers<[1], [0], [0], [1], [0, 0, 1, 1], [], []>} : vector<128x128xbf16>, vector<128x128xbf16>, vector<128x128xf32> -> vector<128x128xf32>
    %21 = arith.addf %17, %20 : vector<128x128xf32>
    %22 = math.absf %21 : vector<128x128xf32>
    %cst_9 = arith.constant dense<0.000000e+00> : vector<128xf32>
    %23 = vector.multi_reduction <add>, %22, %cst_9 [0] : vector<128x128xf32> to vector<128xf32>
    %c0_10 = arith.constant 0 : index
    %c128 = arith.constant 128 : index
    %c0_11 = arith.constant 0 : index
    %24 = vector.load %arg2[%c0_10, %c128, %c0_11] : memref<2x256x128xbf16, #tpu.memory_space<vmem>>, vector<1x128x128xbf16>
    %25 = vector.shape_cast %24 : vector<1x128x128xbf16> to vector<128x128xbf16>
    %cst_12 = arith.constant dense<0.000000e+00> : vector<128x128xf32>
    %26 = tpu.matmul %25, %14, %cst_12 {dimension_numbers = #tpu.dot_dimension_numbers<[1], [0], [0], [1], [0, 0, 1, 1], [], []>} : vector<128x128xbf16>, vector<128x128xbf16>, vector<128x128xf32> -> vector<128x128xf32>
    %c1_13 = arith.constant 1 : index
    %c128_14 = arith.constant 128 : index
    %c0_15 = arith.constant 0 : index
    %27 = vector.load %arg2[%c1_13, %c128_14, %c0_15] : memref<2x256x128xbf16, #tpu.memory_space<vmem>>, vector<1x128x128xbf16>
    %28 = vector.shape_cast %27 : vector<1x128x128xbf16> to vector<128x128xbf16>
    %cst_16 = arith.constant dense<0.000000e+00> : vector<128x128xf32>
    %29 = tpu.matmul %28, %14, %cst_16 {dimension_numbers = #tpu.dot_dimension_numbers<[1], [0], [0], [1], [0, 0, 1, 1], [], []>} : vector<128x128xbf16>, vector<128x128xbf16>, vector<128x128xf32> -> vector<128x128xf32>
    %30 = arith.addf %26, %29 : vector<128x128xf32>
    %31 = arith.mulf %30, %30 : vector<128x128xf32>
    %cst_17 = arith.constant dense<0.000000e+00> : vector<128xf32>
    %32 = vector.multi_reduction <add>, %31, %cst_17 [0] : vector<128x128xf32> to vector<128xf32>
    %33 = math.sqrt %32 : vector<128xf32>
    %c0_18 = arith.constant 0 : index
    %c0_19 = arith.constant 0 : index
    %34 = vector.load %arg3[%c0_18, %c0_19] : memref<2x128xf32, #tpu.memory_space<vmem>>, vector<1x128xf32>
    %35 = vector.shape_cast %34 : vector<1x128xf32> to vector<128xf32>
    %36 = vector.shape_cast %33 : vector<128xf32> to vector<1x128xf32>
    tpu.vector_store %arg3[%c0_18, %c0_19], %36 {strides = array<i32>} : memref<2x128xf32, #tpu.memory_space<vmem>>, vector<1x128xf32>,
    %c1_20 = arith.constant 1 : index
    %c0_21 = arith.constant 0 : index
    %37 = vector.load %arg3[%c1_20, %c0_21] : memref<2x128xf32, #tpu.memory_space<vmem>>, vector<1x128xf32>
    %38 = vector.shape_cast %37 : vector<1x128xf32> to vector<128xf32>
    %39 = vector.shape_cast %23 : vector<128xf32> to vector<1x128xf32>
    tpu.vector_store %arg3[%c1_20, %c0_21], %39 {strides = array<i32>} : memref<2x128xf32, #tpu.memory_space<vmem>>, vector<1x128xf32>,
    return
  }
  func.func @transform_0(%arg0: i32) -> (i32, i32) {
    %c0_i32 = arith.constant 0 : i32
    %c0_i32_0 = arith.constant 0 : i32
    return %c0_i32, %arg0 : i32, i32
  }
  func.func @transform_1(%arg0: i32) -> (i32, i32, i32) {
    %c0_i32 = arith.constant 0 : i32
    %c0_i32_0 = arith.constant 0 : i32
    %c0_i32_1 = arith.constant 0 : i32
    %c0_i32_2 = arith.constant 0 : i32
    return %c0_i32, %c0_i32_0, %c0_i32_1 : i32, i32, i32
  }
  func.func @transform_2(%arg0: i32) -> (i32, i32) {
    %c0_i32 = arith.constant 0 : i32
    %c0_i32_0 = arith.constant 0 : i32
    return %c0_i32, %arg0 : i32, i32
  }
}

module attributes {stable_mosaic.version = 11 : i64} {
  func.func @l2_kernel(%arg0: i32, %arg1: memref<2x128xi32, #tpu.memory_space<vmem>>, %arg2: memref<2x256x128xbf16, #tpu.memory_space<vmem>>, %arg3: memref<2x128xf32, #tpu.memory_space<vmem>>) attributes {dimension_semantics = [#tpu.dimension_semantics<parallel>], iteration_bounds = array<i64: 1>, scalar_prefetch = 0 : i64, scratch_operands = 0 : i64, tpu.core_type = #tpu.core_type<tc>, window_params = [{transform_indices = @transform_0, window_bounds = array<i64: 2, 128>}, {pipeline_mode = #tpu.pipeline_mode<synchronous>, transform_indices = @transform_1, window_bounds = array<i64: 2, 256, 128>}, {transform_indices = @transform_2, window_bounds = array<i64: 2, 128>}]} {
    %c0 = arith.constant 0 : index
    %c0_0 = arith.constant 0 : index
    %0 = vector.load %arg1[%c0, %c0_0] : memref<2x128xi32, #tpu.memory_space<vmem>>, vector<1x128xi32>
    %c1 = arith.constant 1 : index
    %c0_1 = arith.constant 0 : index
    %1 = vector.load %arg1[%c1, %c0_1] : memref<2x128xi32, #tpu.memory_space<vmem>>, vector<1x128xi32>
    %c8_i32 = arith.constant 8 : i32
    %2 = vector.broadcast %c8_i32 : i32 to vector<1x128xi32>
    %3 = arith.addi %1, %2 : vector<1x128xi32>
    %4 = tpu.iota {dimensions = array<i32: 0>} : vector<128x128xi32>
    %5 = vector.broadcast %0 : vector<1x128xi32> to vector<128x128xi32>
    %6 = arith.cmpi eq, %4, %5 : vector<128x128xi32>
    %7 = arith.extui %6 : vector<128x128xi1> to vector<128x128xi32>
    %8 = arith.sitofp %7 : vector<128x128xi32> to vector<128x128xf32>
    %9 = vector.broadcast %3 : vector<1x128xi32> to vector<128x128xi32>
    %10 = arith.cmpi eq, %4, %9 : vector<128x128xi32>
    %11 = arith.extui %10 : vector<128x128xi1> to vector<128x128xi32>
    %12 = arith.sitofp %11 : vector<128x128xi32> to vector<128x128xf32>
    %13 = arith.subf %8, %12 : vector<128x128xf32>
    %14 = arith.truncf %13 : vector<128x128xf32> to vector<128x128xbf16>
    %c0_2 = arith.constant 0 : index
    %c0_3 = arith.constant 0 : index
    %c0_4 = arith.constant 0 : index
    %15 = vector.load %arg2[%c0_2, %c0_3, %c0_4] : memref<2x256x128xbf16, #tpu.memory_space<vmem>>, vector<1x128x128xbf16>
    %16 = vector.shape_cast %15 : vector<1x128x128xbf16> to vector<128x128xbf16>
    %cst = arith.constant dense<0.000000e+00> : vector<128x128xf32>
    %17 = tpu.matmul %16, %14, %cst {dimension_numbers = #tpu.dot_dimension_numbers<[1], [0], [0], [1], [0, 0, 1, 1], [], []>} : vector<128x128xbf16>, vector<128x128xbf16>, vector<128x128xf32> -> vector<128x128xf32>
    %c1_5 = arith.constant 1 : index
    %c0_6 = arith.constant 0 : index
    %c0_7 = arith.constant 0 : index
    %18 = vector.load %arg2[%c1_5, %c0_6, %c0_7] : memref<2x256x128xbf16, #tpu.memory_space<vmem>>, vector<1x128x128xbf16>
    %19 = vector.shape_cast %18 : vector<1x128x128xbf16> to vector<128x128xbf16>
    %cst_8 = arith.constant dense<0.000000e+00> : vector<128x128xf32>
    %20 = tpu.matmul %19, %14, %cst_8 {dimension_numbers = #tpu.dot_dimension_numbers<[1], [0], [0], [1], [0, 0, 1, 1], [], []>} : vector<128x128xbf16>, vector<128x128xbf16>, vector<128x128xf32> -> vector<128x128xf32>
    %21 = arith.addf %17, %20 : vector<128x128xf32>
    %22 = math.absf %21 : vector<128x128xf32>
    %cst_9 = arith.constant dense<0.000000e+00> : vector<128xf32>
    %23 = vector.multi_reduction <add>, %22, %cst_9 [0] : vector<128x128xf32> to vector<128xf32>
    %c0_10 = arith.constant 0 : index
    %c128 = arith.constant 128 : index
    %c0_11 = arith.constant 0 : index
    %24 = vector.load %arg2[%c0_10, %c128, %c0_11] : memref<2x256x128xbf16, #tpu.memory_space<vmem>>, vector<1x128x128xbf16>
    %25 = vector.shape_cast %24 : vector<1x128x128xbf16> to vector<128x128xbf16>
    %cst_12 = arith.constant dense<0.000000e+00> : vector<128x128xf32>
    %26 = tpu.matmul %25, %14, %cst_12 {dimension_numbers = #tpu.dot_dimension_numbers<[1], [0], [0], [1], [0, 0, 1, 1], [], []>} : vector<128x128xbf16>, vector<128x128xbf16>, vector<128x128xf32> -> vector<128x128xf32>
    %c1_13 = arith.constant 1 : index
    %c128_14 = arith.constant 128 : index
    %c0_15 = arith.constant 0 : index
    %27 = vector.load %arg2[%c1_13, %c128_14, %c0_15] : memref<2x256x128xbf16, #tpu.memory_space<vmem>>, vector<1x128x128xbf16>
    %28 = vector.shape_cast %27 : vector<1x128x128xbf16> to vector<128x128xbf16>
    %cst_16 = arith.constant dense<0.000000e+00> : vector<128x128xf32>
    %29 = tpu.matmul %28, %14, %cst_16 {dimension_numbers = #tpu.dot_dimension_numbers<[1], [0], [0], [1], [0, 0, 1, 1], [], []>} : vector<128x128xbf16>, vector<128x128xbf16>, vector<128x128xf32> -> vector<128x128xf32>
    %30 = arith.addf %26, %29 : vector<128x128xf32>
    %31 = arith.mulf %30, %30 : vector<128x128xf32>
    %cst_17 = arith.constant dense<0.000000e+00> : vector<128xf32>
    %32 = vector.multi_reduction <add>, %31, %cst_17 [0] : vector<128x128xf32> to vector<128xf32>
    %33 = math.sqrt %32 : vector<128xf32>
    %c0_18 = arith.constant 0 : index
    %c0_19 = arith.constant 0 : index
    %34 = vector.load %arg3[%c0_18, %c0_19] : memref<2x128xf32, #tpu.memory_space<vmem>>, vector<1x128xf32>
    %35 = vector.shape_cast %34 : vector<1x128xf32> to vector<128xf32>
    %36 = vector.shape_cast %33 : vector<128xf32> to vector<1x128xf32>
    tpu.vector_store %arg3[%c0_18, %c0_19], %36 {strides = array<i32>} : memref<2x128xf32, #tpu.memory_space<vmem>>, vector<1x128xf32>,
    %c1_20 = arith.constant 1 : index
    %c0_21 = arith.constant 0 : index
    %37 = vector.load %arg3[%c1_20, %c0_21] : memref<2x128xf32, #tpu.memory_space<vmem>>, vector<1x128xf32>
    %38 = vector.shape_cast %37 : vector<1x128xf32> to vector<128xf32>
    %39 = vector.shape_cast %23 : vector<128xf32> to vector<1x128xf32>
    tpu.vector_store %arg3[%c1_20, %c0_21], %39 {strides = array<i32>} : memref<2x128xf32, #tpu.memory_space<vmem>>, vector<1x128xf32>,
    return
  }
  func.func @transform_0(%arg0: i32) -> (i32, i32) {
    %c0_i32 = arith.constant 0 : i32
    %c0_i32_0 = arith.constant 0 : i32
    return %c0_i32, %arg0 : i32, i32
  }
  func.func @transform_1(%arg0: i32) -> (i32, i32, i32) {
    %c0_i32 = arith.constant 0 : i32
    %c0_i32_0 = arith.constant 0 : i32
    %c0_i32_1 = arith.constant 0 : i32
    %c0_i32_2 = arith.constant 0 : i32
    return %c0_i32, %c0_i32_0, %c0_i32_1 : i32, i32, i32
  }
  func.func @transform_2(%arg0: i32) -> (i32, i32) {
    %c0_i32 = arith.constant 0 : i32
    %c0_i32_0 = arith.constant 0 : i32
    return %c0_i32, %arg0 : i32, i32
  }
}

</mosaic_0001>

<llo_original>
// kernel: _l2_forward_impl.1
$region0: #{_l2_forward_impl.1}
  #allocation0 [shape = 'u32[]', space=smem, size = 0x4, offset = 0x4, fixed_abs, tag = 'smem constant byte address 0x4 - core index']
  #allocation1 [shape = 'u32[144,128]{1,0:T(1,128)}', space=vmem, size = 0x12000, scoped, tag = 'internal scratch']
  %s0 = inlined_call_operand.vmem [shape: s32[2,128], index: 0, kind: input, shape index: {}]
  %s1 = inlined_call_operand.vmem [shape: bf16[2,256,128], index: 1, kind: input, shape index: {}]
  %s2 = inlined_call_operand.vmem [shape: f32[2,128], index: 2, kind: output, shape index: {}]
  %s3 = sld [smem:[#allocation0]]
  $region18: #{_l2_forward_impl.1} parent=0
    _
  %s5 = ssub.s32 1, %s3
  %s6 = scalar_select 0, %s5, %s3
  // Predicated region
  $region2: #{_l2_forward_impl.1} parent=0 // pred_check
    _
  $region3: #{_l2_forward_impl.1} parent=0 // pred_check_branch
    %8 = sbr.rel (0) target = $region5
  $region4: #{_l2_forward_impl.1} parent=0 // pred_region
    _
  $region5: #{_l2_forward_impl.1} parent=0 // pred_fallthru
    _
  // Predicated region
  $region6: #{_l2_forward_impl.1} parent=0 // pred_check
    _
  $region7: #{_l2_forward_impl.1} parent=0 // pred_check_branch
    %10 = sbr.rel (0) target = $region9
  $region8: #{_l2_forward_impl.1} parent=0 // pred_region
    _
  $region9: #{_l2_forward_impl.1} parent=0 // pred_fallthru
    _
  %v12 = vld [vmem:[%s0] sm:$0x1]
  %v13 = vld [vmem:[%s0 + $0x1] sm:$0x1]
  %v14 = vadd.s32 %v13, 8
  %v15 = vlaneseq
  %v16 = vshrl.u32 %v15, 7
  %v17 = vadd.s32 %v16, 8
  %v18 = vadd.s32 %v16, 16
  %v19 = vadd.s32 %v16, 24
  %v20 = vadd.s32 %v16, 32
  %v21 = vadd.s32 %v16, 40
  %v22 = vadd.s32 %v16, 48
  %v23 = vadd.s32 %v16, 56
  %v24 = vadd.s32 %v16, 64
  %v25 = vadd.s32 %v16, 72
  %v26 = vadd.s32 %v16, 80
  %v27 = vadd.s32 %v16, 88
  %v28 = vadd.s32 %v16, 96
  %v29 = vadd.s32 %v16, 104
  %v30 = vadd.s32 %v16, 112
  %v31 = vadd.s32 %v16, 120
  %v32 = vlaneseq
  %v33 = vshrl.u32 %v32, 7
  %v34 = vsub.s32 0, %v33
  %v35 = vrot.slane %v12, %v34
  %vm36 = vcmp.eq.s32.totalorder %v16, %v35
  %vm37 = vcmp.eq.s32.totalorder %v17, %v35
  %vm38 = vcmp.eq.s32.totalorder %v18, %v35
  %vm39 = vcmp.eq.s32.totalorder %v19, %v35
  %vm40 = vcmp.eq.s32.totalorder %v20, %v35
  %vm41 = vcmp.eq.s32.totalorder %v21, %v35
  %vm42 = vcmp.eq.s32.totalorder %v22, %v35
  %vm43 = vcmp.eq.s32.totalorder %v23, %v35
  %vm44 = vcmp.eq.s32.totalorder %v24, %v35
  %vm45 = vcmp.eq.s32.totalorder %v25, %v35
  %vm46 = vcmp.eq.s32.totalorder %v26, %v35
  %vm47 = vcmp.eq.s32.totalorder %v27, %v35
  %vm48 = vcmp.eq.s32.totalorder %v28, %v35
  %vm49 = vcmp.eq.s32.totalorder %v29, %v35
  %vm50 = vcmp.eq.s32.totalorder %v30, %v35
  %vm51 = vcmp.eq.s32.totalorder %v31, %v35
  %v52 = vsel %vm36, 1, 0
  %v53 = vsel %vm37, 1, 0
  %v54 = vsel %vm38, 1, 0
  %v55 = vsel %vm39, 1, 0
  %v56 = vsel %vm40, 1, 0
  %v57 = vsel %vm41, 1, 0
  %v58 = vsel %vm42, 1, 0
  %v59 = vsel %vm43, 1, 0
  %v60 = vsel %vm44, 1, 0
  %v61 = vsel %vm45, 1, 0
  %v62 = vsel %vm46, 1, 0
  %v63 = vsel %vm47, 1, 0
  %v64 = vsel %vm48, 1, 0
  %v65 = vsel %vm49, 1, 0
  %v66 = vsel %vm50, 1, 0
  %v67 = vsel %vm51, 1, 0
  %v68 = vcvt.s32.f32 %v52
  %v69 = vcvt.s32.f32 %v53
  %v70 = vcvt.s32.f32 %v54
  %v71 = vcvt.s32.f32 %v55
  %v72 = vcvt.s32.f32 %v56
  %v73 = vcvt.s32.f32 %v57
  %v74 = vcvt.s32.f32 %v58
  %v75 = vcvt.s32.f32 %v59
  %v76 = vcvt.s32.f32 %v60
  %v77 = vcvt.s32.f32 %v61
  %v78 = vcvt.s32.f32 %v62
  %v79 = vcvt.s32.f32 %v63
  %v80 = vcvt.s32.f32 %v64
  %v81 = vcvt.s32.f32 %v65
  %v82 = vcvt.s32.f32 %v66
  %v83 = vcvt.s32.f32 %v67
  %v84 = vlaneseq
  %v85 = vshrl.u32 %v84, 7
  %v86 = vsub.s32 0, %v85
  %v87 = vrot.slane %v14, %v86
  %vm88 = vcmp.eq.s32.totalorder %v16, %v87
  %vm89 = vcmp.eq.s32.totalorder %v17, %v87
  %vm90 = vcmp.eq.s32.totalorder %v18, %v87
  %vm91 = vcmp.eq.s32.totalorder %v19, %v87
  %vm92 = vcmp.eq.s32.totalorder %v20, %v87
  %vm93 = vcmp.eq.s32.totalorder %v21, %v87
  %vm94 = vcmp.eq.s32.totalorder %v22, %v87
  %vm95 = vcmp.eq.s32.totalorder %v23, %v87
  %vm96 = vcmp.eq.s32.totalorder %v24, %v87
  %vm97 = vcmp.eq.s32.totalorder %v25, %v87
  %vm98 = vcmp.eq.s32.totalorder %v26, %v87
  %vm99 = vcmp.eq.s32.totalorder %v27, %v87
  %vm100 = vcmp.eq.s32.totalorder %v28, %v87
  %vm101 = vcmp.eq.s32.totalorder %v29, %v87
  %vm102 = vcmp.eq.s32.totalorder %v30, %v87
  %vm103 = vcmp.eq.s32.totalorder %v31, %v87
  %v104 = vsel %vm88, 1, 0
  %v105 = vsel %vm89, 1, 0
  %v106 = vsel %vm90, 1, 0
  %v107 = vsel %vm91, 1, 0
  %v108 = vsel %vm92, 1, 0
  %v109 = vsel %vm93, 1, 0
  %v110 = vsel %vm94, 1, 0
  %v111 = vsel %vm95, 1, 0
  %v112 = vsel %vm96, 1, 0
  %v113 = vsel %vm97, 1, 0
  %v114 = vsel %vm98, 1, 0
  %v115 = vsel %vm99, 1, 0
  %v116 = vsel %vm100, 1, 0
  %v117 = vsel %vm101, 1, 0
  %v118 = vsel %vm102, 1, 0
  %v119 = vsel %vm103, 1, 0
  %v120 = vcvt.s32.f32 %v104
  %v121 = vcvt.s32.f32 %v105
  %v122 = vcvt.s32.f32 %v106
  %v123 = vcvt.s32.f32 %v107
  %v124 = vcvt.s32.f32 %v108
  %v125 = vcvt.s32.f32 %v109
  %v126 = vcvt.s32.f32 %v110
  %v127 = vcvt.s32.f32 %v111
  %v128 = vcvt.s32.f32 %v112
  %v129 = vcvt.s32.f32 %v113
  %v130 = vcvt.s32.f32 %v114
  %v131 = vcvt.s32.f32 %v115
  %v132 = vcvt.s32.f32 %v116
  %v133 = vcvt.s32.f32 %v117
  %v134 = vcvt.s32.f32 %v118
  %v135 = vcvt.s32.f32 %v119
  %v136 = vsub.f32 %v68, %v120
  %v137 = vsub.f32 %v69, %v121
  %v138 = vsub.f32 %v70, %v122
  %v139 = vsub.f32 %v71, %v123
  %v140 = vsub.f32 %v72, %v124
  %v141 = vsub.f32 %v73, %v125
  %v142 = vsub.f32 %v74, %v126
  %v143 = vsub.f32 %v75, %v127
  %v144 = vsub.f32 %v76, %v128
  %v145 = vsub.f32 %v77, %v129
  %v146 = vsub.f32 %v78, %v130
  %v147 = vsub.f32 %v79, %v131
  %v148 = vsub.f32 %v80, %v132
  %v149 = vsub.f32 %v81, %v133
  %v150 = vsub.f32 %v82, %v134
  %v151 = vsub.f32 %v83, %v135
  %v152 = vpack.c.bf16 %v137, %v136
  %v153 = vpack.c.bf16 %v139, %v138
  %v154 = vpack.c.bf16 %v141, %v140
  %v155 = vpack.c.bf16 %v143, %v142
  %v156 = vpack.c.bf16 %v145, %v144
  %v157 = vpack.c.bf16 %v147, %v146
  %v158 = vpack.c.bf16 %v149, %v148
  %v159 = vpack.c.bf16 %v151, %v150
  %v160 = vld [vmem:[%s1] sm:$0xf]
  %v161 = vld [vmem:[%s1 + $0x4] sm:$0xf]
  %v162 = vld [vmem:[%s1 + $0x8] sm:$0xf]
  %v163 = vld [vmem:[%s1 + $0xc] sm:$0xf]
  %v164 = vld [vmem:[%s1 + $0x10] sm:$0xf]
  %v165 = vld [vmem:[%s1 + $0x14] sm:$0xf]
  %v166 = vld [vmem:[%s1 + $0x18] sm:$0xf]
  %v167 = vld [vmem:[%s1 + $0x1c] sm:$0xf]
  %v168 = vld [vmem:[%s1 + $0x20] sm:$0xf]
  %v169 = vld [vmem:[%s1 + $0x24] sm:$0xf]
  %v170 = vld [vmem:[%s1 + $0x28] sm:$0xf]
  %v171 = vld [vmem:[%s1 + $0x2c] sm:$0xf]
  %v172 = vld [vmem:[%s1 + $0x30] sm:$0xf]
  %v173 = vld [vmem:[%s1 + $0x34] sm:$0xf]
  %v174 = vld [vmem:[%s1 + $0x38] sm:$0xf]
  %v175 = vld [vmem:[%s1 + $0x3c] sm:$0xf]
  %s176 = scalar_lea.vmem %s1, 128
  %v177 = vld [vmem:[%s176] sm:$0xf]
  %v178 = vld [vmem:[%s176 + $0x4] sm:$0xf]
  %v179 = vld [vmem:[%s176 + $0x8] sm:$0xf]
  %v180 = vld [vmem:[%s176 + $0xc] sm:$0xf]
  %v181 = vld [vmem:[%s176 + $0x10] sm:$0xf]
  %v182 = vld [vmem:[%s176 + $0x14] sm:$0xf]
  %v183 = vld [vmem:[%s176 + $0x18] sm:$0xf]
  %v184 = vld [vmem:[%s176 + $0x1c] sm:$0xf]
  %v185 = vld [vmem:[%s176 + $0x20] sm:$0xf]
  %v186 = vld [vmem:[%s176 + $0x24] sm:$0xf]
  %v187 = vld [vmem:[%s176 + $0x28] sm:$0xf]
  %v188 = vld [vmem:[%s176 + $0x2c] sm:$0xf]
  %v189 = vld [vmem:[%s176 + $0x30] sm:$0xf]
  %v190 = vld [vmem:[%s176 + $0x34] sm:$0xf]
  %v191 = vld [vmem:[%s176 + $0x38] sm:$0xf]
  %v192 = vld [vmem:[%s176 + $0x3c] sm:$0xf]
  %v209 = vunpack.c.l.b16 %v177
  %v210 = vunpack.c.l.b16 %v178
  %v211 = vunpack.c.l.b16 %v179
  %v212 = vunpack.c.l.b16 %v180
  %v213 = vunpack.c.l.b16 %v181
  %v214 = vunpack.c.l.b16 %v182
  %v215 = vunpack.c.l.b16 %v183
  %v216 = vunpack.c.l.b16 %v184
  %v217 = vunpack.c.l.b16 %v185
  %v218 = vunpack.c.l.b16 %v186
  %v219 = vunpack.c.l.b16 %v187
  %v220 = vunpack.c.l.b16 %v188
  %v221 = vunpack.c.l.b16 %v189
  %v222 = vunpack.c.l.b16 %v190
  %v223 = vunpack.c.l.b16 %v191
  %v224 = vunpack.c.l.b16 %v192
  %v225 = vpack.c.b16 %v210, %v209
  %v226 = vpack.c.b16 %v212, %v211
  %v227 = vpack.c.b16 %v214, %v213
  %v228 = vpack.c.b16 %v216, %v215
  %v229 = vpack.c.b16 %v218, %v217
  %v230 = vpack.c.b16 %v220, %v219
  %v231 = vpack.c.b16 %v222, %v221
  %v232 = vpack.c.b16 %v224, %v223
  %241 = vmatprep.subr.bf16.mxu0 0
  %242 = vmatpush1.bf16.msra.mxu0 %v152
  %243 = vmatprep.subr.bf16.mxu0 0
  %244 = vmatpush1.bf16.msra.mxu0 %v153
  %245 = vmatprep.subr.bf16.mxu0 0
  %246 = vmatpush1.bf16.msra.mxu0 %v154
  %247 = vmatprep.subr.bf16.mxu0 0
  %248 = vmatpush1.bf16.msra.mxu0 %v155
  %249 = vmatprep.subr.bf16.mxu0 0
  %250 = vmatpush1.bf16.msra.mxu0 %v156
  %251 = vmatprep.subr.bf16.mxu0 0
  %252 = vmatpush1.bf16.msra.mxu0 %v157
  %253 = vmatprep.subr.bf16.mxu0 0
  %254 = vmatpush1.bf16.msra.mxu0 %v158
  %255 = vmatprep.subr.bf16.mxu0 0
  %256 = vmatpush1.bf16.msra.mxu0 %v159
  %257 = vmatprep.subr.bf16.mxu0 0
  %258 = vmatpush1.bf16.msra.mxu0 0
  %259 = vmatprep.subr.bf16.mxu0 0
  %260 = vmatpush1.bf16.msra.mxu0 0
  %261 = vmatprep.subr.bf16.mxu0 0
  %262 = vmatpush1.bf16.msra.mxu0 0
  %263 = vmatprep.subr.bf16.mxu0 0
  %264 = vmatpush1.bf16.msra.mxu0 0
  %265 = vmatprep.subr.bf16.mxu0 0
  %266 = vmatpush1.bf16.msra.mxu0 0
  %267 = vmatprep.subr.bf16.mxu0 0
  %268 = vmatpush1.bf16.msra.mxu0 0
  %269 = vmatprep.subr.bf16.mxu0 0
  %270 = vmatpush1.bf16.msra.mxu0 0
  %271 = vmatprep.subr.bf16.mxu0 0
  %272 = vmatpush1.bf16.msra.mxu0 0
  %273 = vmatprep.mubr.bf16.mxu0 0
  %274 = vmatmul.mubr.bf16.gmra.mrb[0].mxu0 %v225
  %v275 = vpop.f32.mrb[0].mxu0
  %v276 = vadd.f32 0.0, %v275
  %v277 = vpop.f32.mrb[0].mxu0
  %v278 = vpop.f32.mrb[0].mxu0
  %v279 = vadd.f32 0.0, %v278
  %v280 = vpop.f32.mrb[0].mxu0
  %281 = vmatprep.mubr.bf16.mxu0 0
  %282 = vmatmul.mubr.bf16.gmra.mrb[0].mxu0 %v226
  %v283 = vpop.f32.mrb[0].mxu0
  %v284 = vadd.f32 0.0, %v283
  %v285 = vpop.f32.mrb[0].mxu0
  %v286 = vpop.f32.mrb[0].mxu0
  %v287 = vadd.f32 0.0, %v286
  %v288 = vpop.f32.mrb[0].mxu0
  %289 = vmatprep.mubr.bf16.mxu0 0
  %290 = vmatmul.mubr.bf16.gmra.mrb[0].mxu0 %v227
  %v291 = vpop.f32.mrb[0].mxu0
  %v292 = vadd.f32 0.0, %v291
  %v293 = vpop.f32.mrb[0].mxu0
  %v294 = vpop.f32.mrb[0].mxu0
  %v295 = vadd.f32 0.0, %v294
  %v296 = vpop.f32.mrb[0].mxu0
  %297 = vmatprep.mubr.bf16.mxu0 0
  %298 = vmatmul.mubr.bf16.gmra.mrb[0].mxu0 %v228
  %v299 = vpop.f32.mrb[0].mxu0
  %v300 = vadd.f32 0.0, %v299
  %v301 = vpop.f32.mrb[0].mxu0
  %v302 = vpop.f32.mrb[0].mxu0
  %v303 = vadd.f32 0.0, %v302
  %v304 = vpop.f32.mrb[0].mxu0
  %305 = vmatprep.mubr.bf16.mxu0 0
  %306 = vmatmul.mubr.bf16.gmra.mrb[0].mxu0 %v229
  %v307 = vpop.f32.mrb[0].mxu0
  %v308 = vadd.f32 0.0, %v307
  %v309 = vpop.f32.mrb[0].mxu0
  %v310 = vpop.f32.mrb[0].mxu0
  %v311 = vadd.f32 0.0, %v310
  %v312 = vpop.f32.mrb[0].mxu0
  %313 = vmatprep.mubr.bf16.mxu0 0
  %314 = vmatmul.mubr.bf16.gmra.mrb[0].mxu0 %v230
  %v315 = vpop.f32.mrb[0].mxu0
  %v316 = vadd.f32 0.0, %v315
  %v317 = vpop.f32.mrb[0].mxu0
  %v318 = vpop.f32.mrb[0].mxu0
  %v319 = vadd.f32 0.0, %v318
  %v320 = vpop.f32.mrb[0].mxu0
  %321 = vmatprep.mubr.bf16.mxu0 0
  %322 = vmatmul.mubr.bf16.gmra.mrb[0].mxu0 %v231
  %v323 = vpop.f32.mrb[0].mxu0
  %v324 = vadd.f32 0.0, %v323
  %v325 = vpop.f32.mrb[0].mxu0
  %v326 = vpop.f32.mrb[0].mxu0
  %v327 = vadd.f32 0.0, %v326
  %v328 = vpop.f32.mrb[0].mxu0
  %329 = vmatprep.mubr.bf16.mxu0 0
  %330 = vmatmul.mubr.bf16.gmra.mrb[0].mxu0 %v232
  %v331 = vpop.f32.mrb[0].mxu0
  %v332 = vadd.f32 0.0, %v331
  %v333 = vpop.f32.mrb[0].mxu0
  %v334 = vpop.f32.mrb[0].mxu0
  %v335 = vadd.f32 0.0, %v334
  %v336 = vpop.f32.mrb[0].mxu0
  %337 = vdwg.mxu0
  %v354 = vunpack.c.l.b16 %v160
  %v355 = vunpack.c.l.b16 %v161
  %v356 = vunpack.c.l.b16 %v162
  %v357 = vunpack.c.l.b16 %v163
  %v358 = vunpack.c.l.b16 %v164
  %v359 = vunpack.c.l.b16 %v165
  %v360 = vunpack.c.l.b16 %v166
  %v361 = vunpack.c.l.b16 %v167
  %v362 = vunpack.c.l.b16 %v168
  %v363 = vunpack.c.l.b16 %v169
  %v364 = vunpack.c.l.b16 %v170
  %v365 = vunpack.c.l.b16 %v171
  %v366 = vunpack.c.l.b16 %v172
  %v367 = vunpack.c.l.b16 %v173
  %v368 = vunpack.c.l.b16 %v174
  %v369 = vunpack.c.l.b16 %v175
  %v370 = vpack.c.b16 %v355, %v354
  %v371 = vpack.c.b16 %v357, %v356
  %v372 = vpack.c.b16 %v359, %v358
  %v373 = vpack.c.b16 %v361, %v360
  %v374 = vpack.c.b16 %v363, %v362
  %v375 = vpack.c.b16 %v365, %v364
  %v376 = vpack.c.b16 %v367, %v366
  %v377 = vpack.c.b16 %v369, %v368
  %386 = vmatprep.subr.bf16.mxu0 0
  %387 = vmatpush1.bf16.msra.mxu0 %v152
  %388 = vmatprep.subr.bf16.mxu0 0
  %389 = vmatpush1.bf16.msra.mxu0 %v153
  %390 = vmatprep.subr.bf16.mxu0 0
  %391 = vmatpush1.bf16.msra.mxu0 %v154
  %392 = vmatprep.subr.bf16.mxu0 0
  %393 = vmatpush1.bf16.msra.mxu0 %v155
  %394 = vmatprep.subr.bf16.mxu0 0
  %395 = vmatpush1.bf16.msra.mxu0 %v156
  %396 = vmatprep.subr.bf16.mxu0 0
  %397 = vmatpush1.bf16.msra.mxu0 %v157
  %398 = vmatprep.subr.bf16.mxu0 0
  %399 = vmatpush1.bf16.msra.mxu0 %v158
  %400 = vmatprep.subr.bf16.mxu0 0
  %401 = vmatpush1.bf16.msra.mxu0 %v159
  %402 = vmatprep.subr.bf16.mxu0 0
  %403 = vmatpush1.bf16.msra.mxu0 0
  %404 = vmatprep.subr.bf16.mxu0 0
  %405 = vmatpush1.bf16.msra.mxu0 0
  %406 = vmatprep.subr.bf16.mxu0 0
  %407 = vmatpush1.bf16.msra.mxu0 0
  %408 = vmatprep.subr.bf16.mxu0 0
  %409 = vmatpush1.bf16.msra.mxu0 0
  %410 = vmatprep.subr.bf16.mxu0 0
  %411 = vmatpush1.bf16.msra.mxu0 0
  %412 = vmatprep.subr.bf16.mxu0 0
  %413 = vmatpush1.bf16.msra.mxu0 0
  %414 = vmatprep.subr.bf16.mxu0 0
  %415 = vmatpush1.bf16.msra.mxu0 0
  %416 = vmatprep.subr.bf16.mxu0 0
  %417 = vmatpush1.bf16.msra.mxu0 0
  %418 = vmatprep.mubr.bf16.mxu0 0
  %419 = vmatmul.mubr.bf16.gmra.mrb[0].mxu0 %v370
  %v420 = vpop.f32.mrb[0].mxu0
  %v421 = vadd.f32 %v276, %v420
  %v422 = vpop.f32.mrb[0].mxu0
  %v423 = vpop.f32.mrb[0].mxu0
  %v424 = vadd.f32 %v279, %v423
  %v425 = vpop.f32.mrb[0].mxu0
  %426 = vmatprep.mubr.bf16.mxu0 0
  %427 = vmatmul.mubr.bf16.gmra.mrb[0].mxu0 %v371
  %v428 = vpop.f32.mrb[0].mxu0
  %v429 = vadd.f32 %v284, %v428
  %v430 = vpop.f32.mrb[0].mxu0
  %v431 = vpop.f32.mrb[0].mxu0
  %v432 = vadd.f32 %v287, %v431
  %v433 = vpop.f32.mrb[0].mxu0
  %434 = vmatprep.mubr.bf16.mxu0 0
  %435 = vmatmul.mubr.bf16.gmra.mrb[0].mxu0 %v372
  %v436 = vpop.f32.mrb[0].mxu0
  %v437 = vadd.f32 %v292, %v436
  %v438 = vpop.f32.mrb[0].mxu0
  %v439 = vpop.f32.mrb[0].mxu0
  %v440 = vadd.f32 %v295, %v439
  %v441 = vpop.f32.mrb[0].mxu0
  %442 = vmatprep.mubr.bf16.mxu0 0
  %443 = vmatmul.mubr.bf16.gmra.mrb[0].mxu0 %v373
  %v444 = vpop.f32.mrb[0].mxu0
  %v445 = vadd.f32 %v300, %v444
  %v446 = vpop.f32.mrb[0].mxu0
  %v447 = vpop.f32.mrb[0].mxu0
  %v448 = vadd.f32 %v303, %v447
  %v449 = vpop.f32.mrb[0].mxu0
  %450 = vmatprep.mubr.bf16.mxu0 0
  %451 = vmatmul.mubr.bf16.gmra.mrb[0].mxu0 %v374
  %v452 = vpop.f32.mrb[0].mxu0
  %v453 = vadd.f32 %v308, %v452
  %v454 = vpop.f32.mrb[0].mxu0
  %v455 = vpop.f32.mrb[0].mxu0
  %v456 = vadd.f32 %v311, %v455
  %v457 = vpop.f32.mrb[0].mxu0
  %458 = vmatprep.mubr.bf16.mxu0 0
  %459 = vmatmul.mubr.bf16.gmra.mrb[0].mxu0 %v375
  %v460 = vpop.f32.mrb[0].mxu0
  %v461 = vadd.f32 %v316, %v460
  %v462 = vpop.f32.mrb[0].mxu0
  %v463 = vpop.f32.mrb[0].mxu0
  %v464 = vadd.f32 %v319, %v463
  %v465 = vpop.f32.mrb[0].mxu0
  %466 = vmatprep.mubr.bf16.mxu0 0
  %467 = vmatmul.mubr.bf16.gmra.mrb[0].mxu0 %v376
  %v468 = vpop.f32.mrb[0].mxu0
  %v469 = vadd.f32 %v324, %v468
  %v470 = vpop.f32.mrb[0].mxu0
  %v471 = vpop.f32.mrb[0].mxu0
  %v472 = vadd.f32 %v327, %v471
  %v473 = vpop.f32.mrb[0].mxu0
  %474 = vmatprep.mubr.bf16.mxu0 0
  %475 = vmatmul.mubr.bf16.gmra.mrb[0].mxu0 %v377
  %v476 = vpop.f32.mrb[0].mxu0
  %v477 = vadd.f32 %v332, %v476
  %v478 = vpop.f32.mrb[0].mxu0
  %v479 = vpop.f32.mrb[0].mxu0
  %v480 = vadd.f32 %v335, %v479
  %v481 = vpop.f32.mrb[0].mxu0
  %482 = vdwg.mxu0
  %v483 = vand.u32 2147483647, %v421
  %v484 = vand.u32 2147483647, %v424
  %v485 = vand.u32 2147483647, %v429
  %v486 = vand.u32 2147483647, %v432
  %v487 = vand.u32 2147483647, %v437
  %v488 = vand.u32 2147483647, %v440
  %v489 = vand.u32 2147483647, %v445
  %v490 = vand.u32 2147483647, %v448
  %v491 = vand.u32 2147483647, %v453
  %v492 = vand.u32 2147483647, %v456
  %v493 = vand.u32 2147483647, %v461
  %v494 = vand.u32 2147483647, %v464
  %v495 = vand.u32 2147483647, %v469
  %v496 = vand.u32 2147483647, %v472
  %v497 = vand.u32 2147483647, %v477
  %v498 = vand.u32 2147483647, %v480
  %v499 = vadd.f32 %v483, %v484
  %v500 = vadd.f32 %v499, %v485
  %v501 = vadd.f32 %v500, %v486
  %v502 = vadd.f32 %v501, %v487
  %v503 = vadd.f32 %v502, %v488
  %v504 = vadd.f32 %v503, %v489
  %v505 = vadd.f32 %v504, %v490
  %v506 = vadd.f32 %v505, %v491
  %v507 = vadd.f32 %v506, %v492
  %v508 = vadd.f32 %v507, %v493
  %v509 = vadd.f32 %v508, %v494
  %v510 = vadd.f32 %v509, %v495
  %v511 = vadd.f32 %v510, %v496
  %v512 = vadd.f32 %v511, %v497
  %v513 = vadd.f32 %v512, %v498
  %v514 = vrot.slane %v513, 4
  %v515 = vadd.f32 %v513, %v514
  %v516 = vrot.slane %v515, 2
  %v517 = vadd.f32 %v515, %v516
  %v518 = vrot.slane %v517, 1
  %v519 = vadd.f32 %v517, %v518
  %v520 = vld [vmem:[%s1 + $0x40] sm:$0xf]
  %v521 = vld [vmem:[%s1 + $0x44] sm:$0xf]
  %v522 = vld [vmem:[%s1 + $0x48] sm:$0xf]
  %v523 = vld [vmem:[%s1 + $0x4c] sm:$0xf]
  %v524 = vld [vmem:[%s1 + $0x50] sm:$0xf]
  %v525 = vld [vmem:[%s1 + $0x54] sm:$0xf]
  %v526 = vld [vmem:[%s1 + $0x58] sm:$0xf]
  %v527 = vld [vmem:[%s1 + $0x5c] sm:$0xf]
  %v528 = vld [vmem:[%s1 + $0x60] sm:$0xf]
  %v529 = vld [vmem:[%s1 + $0x64] sm:$0xf]
  %v530 = vld [vmem:[%s1 + $0x68] sm:$0xf]
  %v531 = vld [vmem:[%s1 + $0x6c] sm:$0xf]
  %v532 = vld [vmem:[%s1 + $0x70] sm:$0xf]
  %v533 = vld [vmem:[%s1 + $0x74] sm:$0xf]
  %v534 = vld [vmem:[%s1 + $0x78] sm:$0xf]
  %v535 = vld [vmem:[%s1 + $0x7c] sm:$0xf]
  %v536 = vld [vmem:[%s176 + $0x40] sm:$0xf]
  %v537 = vld [vmem:[%s176 + $0x44] sm:$0xf]
  %v538 = vld [vmem:[%s176 + $0x48] sm:$0xf]
  %v539 = vld [vmem:[%s176 + $0x4c] sm:$0xf]
  %v540 = vld [vmem:[%s176 + $0x50] sm:$0xf]
  %v541 = vld [vmem:[%s176 + $0x54] sm:$0xf]
  %v542 = vld [vmem:[%s176 + $0x58] sm:$0xf]
  %v543 = vld [vmem:[%s176 + $0x5c] sm:$0xf]
  %v544 = vld [vmem:[%s176 + $0x60] sm:$0xf]
  %v545 = vld [vmem:[%s176 + $0x64] sm:$0xf]
  %v546 = vld [vmem:[%s176 + $0x68] sm:$0xf]
  %v547 = vld [vmem:[%s176 + $0x6c] sm:$0xf]
  %v548 = vld [vmem:[%s176 + $0x70] sm:$0xf]
  %v549 = vld [vmem:[%s176 + $0x74] sm:$0xf]
  %v550 = vld [vmem:[%s176 + $0x78] sm:$0xf]
  %v551 = vld [vmem:[%s176 + $0x7c] sm:$0xf]
  %v568 = vunpack.c.l.b16 %v536
  %v569 = vunpack.c.l.b16 %v537
  %v570 = vunpack.c.l.b16 %v538
  %v571 = vunpack.c.l.b16 %v539
  %v572 = vunpack.c.l.b16 %v540
  %v573 = vunpack.c.l.b16 %v541
  %v574 = vunpack.c.l.b16 %v542
  %v575 = vunpack.c.l.b16 %v543
  %v576 = vunpack.c.l.b16 %v544
  %v577 = vunpack.c.l.b16 %v545
  %v578 = vunpack.c.l.b16 %v546
  %v579 = vunpack.c.l.b16 %v547
  %v580 = vunpack.c.l.b16 %v548
  %v581 = vunpack.c.l.b16 %v549
  %v582 = vunpack.c.l.b16 %v550
  %v583 = vunpack.c.l.b16 %v551
  %v584 = vpack.c.b16 %v569, %v568
  %v585 = vpack.c.b16 %v571, %v570
  %v586 = vpack.c.b16 %v573, %v572
  %v587 = vpack.c.b16 %v575, %v574
  %v588 = vpack.c.b16 %v577, %v576
  %v589 = vpack.c.b16 %v579, %v578
  %v590 = vpack.c.b16 %v581, %v580
  %v591 = vpack.c.b16 %v583, %v582
  %600 = vmatprep.subr.bf16.mxu0 0
  %601 = vmatpush1.bf16.msra.mxu0 %v152
  %602 = vmatprep.subr.bf16.mxu0 0
  %603 = vmatpush1.bf16.msra.mxu0 %v153
  %604 = vmatprep.subr.bf16.mxu0 0
  %605 = vmatpush1.bf16.msra.mxu0 %v154
  %606 = vmatprep.subr.bf16.mxu0 0
  %607 = vmatpush1.bf16.msra.mxu0 %v155
  %608 = vmatprep.subr.bf16.mxu0 0
  %609 = vmatpush1.bf16.msra.mxu0 %v156
  %610 = vmatprep.subr.bf16.mxu0 0
  %611 = vmatpush1.bf16.msra.mxu0 %v157
  %612 = vmatprep.subr.bf16.mxu0 0
  %613 = vmatpush1.bf16.msra.mxu0 %v158
  %614 = vmatprep.subr.bf16.mxu0 0
  %615 = vmatpush1.bf16.msra.mxu0 %v159
  %616 = vmatprep.subr.bf16.mxu0 0
  %617 = vmatpush1.bf16.msra.mxu0 0
  %618 = vmatprep.subr.bf16.mxu0 0
  %619 = vmatpush1.bf16.msra.mxu0 0
  %620 = vmatprep.subr.bf16.mxu0 0
  %621 = vmatpush1.bf16.msra.mxu0 0
  %622 = vmatprep.subr.bf16.mxu0 0
  %623 = vmatpush1.bf16.msra.mxu0 0
  %624 = vmatprep.subr.bf16.mxu0 0
  %625 = vmatpush1.bf16.msra.mxu0 0
  %626 = vmatprep.subr.bf16.mxu0 0
  %627 = vmatpush1.bf16.msra.mxu0 0
  %628 = vmatprep.subr.bf16.mxu0 0
  %629 = vmatpush1.bf16.msra.mxu0 0
  %630 = vmatprep.subr.bf16.mxu0 0
  %631 = vmatpush1.bf16.msra.mxu0 0
  %632 = vmatprep.mubr.bf16.mxu0 0
  %633 = vmatmul.mubr.bf16.gmra.mrb[0].mxu0 %v584
  %v634 = vpop.f32.mrb[0].mxu0
  %v635 = vadd.f32 0.0, %v634
  %v636 = vpop.f32.mrb[0].mxu0
  %v637 = vpop.f32.mrb[0].mxu0
  %v638 = vadd.f32 0.0, %v637
  %v639 = vpop.f32.mrb[0].mxu0
  %640 = vmatprep.mubr.bf16.mxu0 0
  %641 = vmatmul.mubr.bf16.gmra.mrb[0].mxu0 %v585
  %v642 = vpop.f32.mrb[0].mxu0
  %v643 = vadd.f32 0.0, %v642
  %v644 = vpop.f32.mrb[0].mxu0
  %v645 = vpop.f32.mrb[0].mxu0
  %v646 = vadd.f32 0.0, %v645
  %v647 = vpop.f32.mrb[0].mxu0
  %648 = vmatprep.mubr.bf16.mxu0 0
  %649 = vmatmul.mubr.bf16.gmra.mrb[0].mxu0 %v586
  %v650 = vpop.f32.mrb[0].mxu0
  %v651 = vadd.f32 0.0, %v650
  %v652 = vpop.f32.mrb[0].mxu0
  %v653 = vpop.f32.mrb[0].mxu0
  %v654 = vadd.f32 0.0, %v653
  %v655 = vpop.f32.mrb[0].mxu0
  %656 = vmatprep.mubr.bf16.mxu0 0
  %657 = vmatmul.mubr.bf16.gmra.mrb[0].mxu0 %v587
  %v658 = vpop.f32.mrb[0].mxu0
  %v659 = vadd.f32 0.0, %v658
  %v660 = vpop.f32.mrb[0].mxu0
  %v661 = vpop.f32.mrb[0].mxu0
  %v662 = vadd.f32 0.0, %v661
  %v663 = vpop.f32.mrb[0].mxu0
  %664 = vmatprep.mubr.bf16.mxu0 0
  %665 = vmatmul.mubr.bf16.gmra.mrb[0].mxu0 %v588
  %v666 = vpop.f32.mrb[0].mxu0
  %v667 = vadd.f32 0.0, %v666
  %v668 = vpop.f32.mrb[0].mxu0
  %v669 = vpop.f32.mrb[0].mxu0
  %v670 = vadd.f32 0.0, %v669
  %v671 = vpop.f32.mrb[0].mxu0
  %672 = vmatprep.mubr.bf16.mxu0 0
  %673 = vmatmul.mubr.bf16.gmra.mrb[0].mxu0 %v589
  %v674 = vpop.f32.mrb[0].mxu0
  %v675 = vadd.f32 0.0, %v674
  %v676 = vpop.f32.mrb[0].mxu0
  %v677 = vpop.f32.mrb[0].mxu0
  %v678 = vadd.f32 0.0, %v677
  %v679 = vpop.f32.mrb[0].mxu0
  %680 = vmatprep.mubr.bf16.mxu0 0
  %681 = vmatmul.mubr.bf16.gmra.mrb[0].mxu0 %v590
  %v682 = vpop.f32.mrb[0].mxu0
  %v683 = vadd.f32 0.0, %v682
  %v684 = vpop.f32.mrb[0].mxu0
  %v685 = vpop.f32.mrb[0].mxu0
  %v686 = vadd.f32 0.0, %v685
  %v687 = vpop.f32.mrb[0].mxu0
  %688 = vmatprep.mubr.bf16.mxu0 0
  %689 = vmatmul.mubr.bf16.gmra.mrb[0].mxu0 %v591
  %v690 = vpop.f32.mrb[0].mxu0
  %v691 = vadd.f32 0.0, %v690
  %v692 = vpop.f32.mrb[0].mxu0
  %v693 = vpop.f32.mrb[0].mxu0
  %v694 = vadd.f32 0.0, %v693
  %v695 = vpop.f32.mrb[0].mxu0
  %696 = vdwg.mxu0
  %v713 = vunpack.c.l.b16 %v520
  %v714 = vunpack.c.l.b16 %v521
  %v715 = vunpack.c.l.b16 %v522
  %v716 = vunpack.c.l.b16 %v523
  %v717 = vunpack.c.l.b16 %v524
  %v718 = vunpack.c.l.b16 %v525
  %v719 = vunpack.c.l.b16 %v526
  %v720 = vunpack.c.l.b16 %v527
  %v721 = vunpack.c.l.b16 %v528
  %v722 = vunpack.c.l.b16 %v529
  %v723 = vunpack.c.l.b16 %v530
  %v724 = vunpack.c.l.b16 %v531
  %v725 = vunpack.c.l.b16 %v532
  %v726 = vunpack.c.l.b16 %v533
  %v727 = vunpack.c.l.b16 %v534
  %v728 = vunpack.c.l.b16 %v535
  %v729 = vpack.c.b16 %v714, %v713
  %v730 = vpack.c.b16 %v716, %v715
  %v731 = vpack.c.b16 %v718, %v717
  %v732 = vpack.c.b16 %v720, %v719
  %v733 = vpack.c.b16 %v722, %v721
  %v734 = vpack.c.b16 %v724, %v723
  %v735 = vpack.c.b16 %v726, %v725
  %v736 = vpack.c.b16 %v728, %v727
  %745 = vmatprep.subr.bf16.mxu0 0
  %746 = vmatpush1.bf16.msra.mxu0 %v152
  %747 = vmatprep.subr.bf16.mxu0 0
  %748 = vmatpush1.bf16.msra.mxu0 %v153
  %749 = vmatprep.subr.bf16.mxu0 0
  %750 = vmatpush1.bf16.msra.mxu0 %v154
  %751 = vmatprep.subr.bf16.mxu0 0
  %752 = vmatpush1.bf16.msra.mxu0 %v155
  %753 = vmatprep.subr.bf16.mxu0 0
  %754 = vmatpush1.bf16.msra.mxu0 %v156
  %755 = vmatprep.subr.bf16.mxu0 0
  %756 = vmatpush1.bf16.msra.mxu0 %v157
  %757 = vmatprep.subr.bf16.mxu0 0
  %758 = vmatpush1.bf16.msra.mxu0 %v158
  %759 = vmatprep.subr.bf16.mxu0 0
  %760 = vmatpush1.bf16.msra.mxu0 %v159
  %761 = vmatprep.subr.bf16.mxu0 0
  %762 = vmatpush1.bf16.msra.mxu0 0
  %763 = vmatprep.subr.bf16.mxu0 0
  %764 = vmatpush1.bf16.msra.mxu0 0
  %765 = vmatprep.subr.bf16.mxu0 0
  %766 = vmatpush1.bf16.msra.mxu0 0
  %767 = vmatprep.subr.bf16.mxu0 0
  %768 = vmatpush1.bf16.msra.mxu0 0
  %769 = vmatprep.subr.bf16.mxu0 0
  %770 = vmatpush1.bf16.msra.mxu0 0
  %771 = vmatprep.subr.bf16.mxu0 0
  %772 = vmatpush1.bf16.msra.mxu0 0
  %773 = vmatprep.subr.bf16.mxu0 0
  %774 = vmatpush1.bf16.msra.mxu0 0
  %775 = vmatprep.subr.bf16.mxu0 0
  %776 = vmatpush1.bf16.msra.mxu0 0
  %777 = vmatprep.mubr.bf16.mxu0 0
  %778 = vmatmul.mubr.bf16.gmra.mrb[0].mxu0 %v729
  %v779 = vpop.f32.mrb[0].mxu0
  %v780 = vadd.f32 %v635, %v779
  %v781 = vpop.f32.mrb[0].mxu0
  %v782 = vpop.f32.mrb[0].mxu0
  %v783 = vadd.f32 %v638, %v782
  %v784 = vpop.f32.mrb[0].mxu0
  %785 = vmatprep.mubr.bf16.mxu0 0
  %786 = vmatmul.mubr.bf16.gmra.mrb[0].mxu0 %v730
  %v787 = vpop.f32.mrb[0].mxu0
  %v788 = vadd.f32 %v643, %v787
  %v789 = vpop.f32.mrb[0].mxu0
  %v790 = vpop.f32.mrb[0].mxu0
  %v791 = vadd.f32 %v646, %v790
  %v792 = vpop.f32.mrb[0].mxu0
  %793 = vmatprep.mubr.bf16.mxu0 0
  %794 = vmatmul.mubr.bf16.gmra.mrb[0].mxu0 %v731
  %v795 = vpop.f32.mrb[0].mxu0
  %v796 = vadd.f32 %v651, %v795
  %v797 = vpop.f32.mrb[0].mxu0
  %v798 = vpop.f32.mrb[0].mxu0
  %v799 = vadd.f32 %v654, %v798
  %v800 = vpop.f32.mrb[0].mxu0
  %801 = vmatprep.mubr.bf16.mxu0 0
  %802 = vmatmul.mubr.bf16.gmra.mrb[0].mxu0 %v732
  %v803 = vpop.f32.mrb[0].mxu0
  %v804 = vadd.f32 %v659, %v803
  %v805 = vpop.f32.mrb[0].mxu0
  %v806 = vpop.f32.mrb[0].mxu0
  %v807 = vadd.f32 %v662, %v806
  %v808 = vpop.f32.mrb[0].mxu0
  %809 = vmatprep.mubr.bf16.mxu0 0
  %810 = vmatmul.mubr.bf16.gmra.mrb[0].mxu0 %v733
  %v811 = vpop.f32.mrb[0].mxu0
  %v812 = vadd.f32 %v667, %v811
  %v813 = vpop.f32.mrb[0].mxu0
  %v814 = vpop.f32.mrb[0].mxu0
  %v815 = vadd.f32 %v670, %v814
  %v816 = vpop.f32.mrb[0].mxu0
  %817 = vmatprep.mubr.bf16.mxu0 0
  %818 = vmatmul.mubr.bf16.gmra.mrb[0].mxu0 %v734
  %v819 = vpop.f32.mrb[0].mxu0
  %v820 = vadd.f32 %v675, %v819
  %v821 = vpop.f32.mrb[0].mxu0
  %v822 = vpop.f32.mrb[0].mxu0
  %v823 = vadd.f32 %v678, %v822
  %v824 = vpop.f32.mrb[0].mxu0
  %825 = vmatprep.mubr.bf16.mxu0 0
  %826 = vmatmul.mubr.bf16.gmra.mrb[0].mxu0 %v735
  %v827 = vpop.f32.mrb[0].mxu0
  %v828 = vadd.f32 %v683, %v827
  %v829 = vpop.f32.mrb[0].mxu0
  %v830 = vpop.f32.mrb[0].mxu0
  %v831 = vadd.f32 %v686, %v830
  %v832 = vpop.f32.mrb[0].mxu0
  %833 = vmatprep.mubr.bf16.mxu0 0
  %834 = vmatmul.mubr.bf16.gmra.mrb[0].mxu0 %v736
  %v835 = vpop.f32.mrb[0].mxu0
  %v836 = vadd.f32 %v691, %v835
  %v837 = vpop.f32.mrb[0].mxu0
  %v838 = vpop.f32.mrb[0].mxu0
  %v839 = vadd.f32 %v694, %v838
  %v840 = vpop.f32.mrb[0].mxu0
  %841 = vdwg.mxu0
  %v842 = vmul.f32 %v780, %v780
  %v843 = vmul.f32 %v783, %v783
  %v844 = vmul.f32 %v788, %v788
  %v845 = vmul.f32 %v791, %v791
  %v846 = vmul.f32 %v796, %v796
  %v847 = vmul.f32 %v799, %v799
  %v848 = vmul.f32 %v804, %v804
  %v849 = vmul.f32 %v807, %v807
  %v850 = vmul.f32 %v812, %v812
  %v851 = vmul.f32 %v815, %v815
  %v852 = vmul.f32 %v820, %v820
  %v853 = vmul.f32 %v823, %v823
  %v854 = vmul.f32 %v828, %v828
  %v855 = vmul.f32 %v831, %v831
  %v856 = vmul.f32 %v836, %v836
  %v857 = vmul.f32 %v839, %v839
  %v858 = vadd.f32 %v842, %v843
  %v859 = vadd.f32 %v858, %v844
  %v860 = vadd.f32 %v859, %v845
  %v861 = vadd.f32 %v860, %v846
  %v862 = vadd.f32 %v861, %v847
  %v863 = vadd.f32 %v862, %v848
  %v864 = vadd.f32 %v863, %v849
  %v865 = vadd.f32 %v864, %v850
  %v866 = vadd.f32 %v865, %v851
  %v867 = vadd.f32 %v866, %v852
  %v868 = vadd.f32 %v867, %v853
  %v869 = vadd.f32 %v868, %v854
  %v870 = vadd.f32 %v869, %v855
  %v871 = vadd.f32 %v870, %v856
  %v872 = vadd.f32 %v871, %v857
  %v873 = vrot.slane %v872, 4
  %v874 = vadd.f32 %v872, %v873
  %v875 = vrot.slane %v874, 2
  %v876 = vadd.f32 %v874, %v875
  %v877 = vrot.slane %v876, 1
  %v878 = vadd.f32 %v876, %v877
  %v879 = vrsqrt.pop %v878
  %v880 = vmul.f32 %v878, %v879
  %vm881 = vcmp.eq.f32.partialorder %v878, inf
  %v882 = vsel %vm881, %v878, %v880
  %vm883 = vcmp.eq.f32.partialorder %v878, 0.0
  %v884 = vand.u32 %v878, 2147483648
  %v885 = vsel %vm883, %v884, %v882
  %886 = vst [vmem:[%s2] sm:$0x1] %v885
  %887 = vst [vmem:[%s2 + $0x1] sm:$0x1] %v519
  // Predicated region
  $region10: #{_l2_forward_impl.1} parent=0 // pred_check
    _
  $region11: #{_l2_forward_impl.1} parent=0 // pred_check_branch
    %889 = sbr.rel (0) target = $region13
  $region12: #{_l2_forward_impl.1} parent=0 // pred_region
    _
  $region13: #{_l2_forward_impl.1} parent=0 // pred_fallthru
    _
  // Predicated region
  $region14: #{_l2_forward_impl.1} parent=0 // pred_check
    _
  $region15: #{_l2_forward_impl.1} parent=0 // pred_check_branch
    %891 = sbr.rel (0) target = $region17
  $region16: #{_l2_forward_impl.1} parent=0 // pred_region
    _
  $region17: #{_l2_forward_impl.1} parent=0 // pred_fallthru
    _

// kernel: _l2_forward_impl.1
$region0: #{_l2_forward_impl.1}
  #allocation0 [shape = 'u32[]', space=smem, size = 0x4, offset = 0x4, fixed_abs, tag = 'smem constant byte address 0x4 - core index']
  #allocation1 [shape = 'u32[144,128]{1,0:T(1,128)}', space=vmem, size = 0x12000, scoped, tag = 'internal scratch']
  %s0 = inlined_call_operand.vmem [shape: s32[2,128], index: 0, kind: input, shape index: {}]
  %s1 = inlined_call_operand.vmem [shape: bf16[2,256,128], index: 1, kind: input, shape index: {}]
  %s2 = inlined_call_operand.vmem [shape: f32[2,128], index: 2, kind: output, shape index: {}]
  %s3 = sld [smem:[#allocation0]]
  $region18: #{_l2_forward_impl.1} parent=0
    _
  %s5 = ssub.s32 1, %s3
  %s6 = scalar_select 0, %s5, %s3
  // Predicated region
  $region2: #{_l2_forward_impl.1} parent=0 // pred_check
    _
  $region3: #{_l2_forward_impl.1} parent=0 // pred_check_branch
    %8 = sbr.rel (0) target = $region5
  $region4: #{_l2_forward_impl.1} parent=0 // pred_region
    _
  $region5: #{_l2_forward_impl.1} parent=0 // pred_fallthru
    _
  // Predicated region
  $region6: #{_l2_forward_impl.1} parent=0 // pred_check
    _
  $region7: #{_l2_forward_impl.1} parent=0 // pred_check_branch
    %10 = sbr.rel (0) target = $region9
  $region8: #{_l2_forward_impl.1} parent=0 // pred_region
    _
  $region9: #{_l2_forward_impl.1} parent=0 // pred_fallthru
    _
  %v12 = vld [vmem:[%s0] sm:$0x1]
  %v13 = vld [vmem:[%s0 + $0x1] sm:$0x1]
  %v14 = vadd.s32 %v13, 8
  %v15 = vlaneseq
  %v16 = vshrl.u32 %v15, 7
  %v17 = vadd.s32 %v16, 8
  %v18 = vadd.s32 %v16, 16
  %v19 = vadd.s32 %v16, 24
  %v20 = vadd.s32 %v16, 32
  %v21 = vadd.s32 %v16, 40
  %v22 = vadd.s32 %v16, 48
  %v23 = vadd.s32 %v16, 56
  %v24 = vadd.s32 %v16, 64
  %v25 = vadd.s32 %v16, 72
  %v26 = vadd.s32 %v16, 80
  %v27 = vadd.s32 %v16, 88
  %v28 = vadd.s32 %v16, 96
  %v29 = vadd.s32 %v16, 104
  %v30 = vadd.s32 %v16, 112
  %v31 = vadd.s32 %v16, 120
  %v32 = vlaneseq
  %v33 = vshrl.u32 %v32, 7
  %v34 = vsub.s32 0, %v33
  %v35 = vrot.slane %v12, %v34
  %vm36 = vcmp.eq.s32.totalorder %v16, %v35
  %vm37 = vcmp.eq.s32.totalorder %v17, %v35
  %vm38 = vcmp.eq.s32.totalorder %v18, %v35
  %vm39 = vcmp.eq.s32.totalorder %v19, %v35
  %vm40 = vcmp.eq.s32.totalorder %v20, %v35
  %vm41 = vcmp.eq.s32.totalorder %v21, %v35
  %vm42 = vcmp.eq.s32.totalorder %v22, %v35
  %vm43 = vcmp.eq.s32.totalorder %v23, %v35
  %vm44 = vcmp.eq.s32.totalorder %v24, %v35
  %vm45 = vcmp.eq.s32.totalorder %v25, %v35
  %vm46 = vcmp.eq.s32.totalorder %v26, %v35
  %vm47 = vcmp.eq.s32.totalorder %v27, %v35
  %vm48 = vcmp.eq.s32.totalorder %v28, %v35
  %vm49 = vcmp.eq.s32.totalorder %v29, %v35
  %vm50 = vcmp.eq.s32.totalorder %v30, %v35
  %vm51 = vcmp.eq.s32.totalorder %v31, %v35
  %v52 = vsel %vm36, 1, 0
  %v53 = vsel %vm37, 1, 0
  %v54 = vsel %vm38, 1, 0
  %v55 = vsel %vm39, 1, 0
  %v56 = vsel %vm40, 1, 0
  %v57 = vsel %vm41, 1, 0
  %v58 = vsel %vm42, 1, 0
  %v59 = vsel %vm43, 1, 0
  %v60 = vsel %vm44, 1, 0
  %v61 = vsel %vm45, 1, 0
  %v62 = vsel %vm46, 1, 0
  %v63 = vsel %vm47, 1, 0
  %v64 = vsel %vm48, 1, 0
  %v65 = vsel %vm49, 1, 0
  %v66 = vsel %vm50, 1, 0
  %v67 = vsel %vm51, 1, 0
  %v68 = vcvt.s32.f32 %v52
  %v69 = vcvt.s32.f32 %v53
  %v70 = vcvt.s32.f32 %v54
  %v71 = vcvt.s32.f32 %v55
  %v72 = vcvt.s32.f32 %v56
  %v73 = vcvt.s32.f32 %v57
  %v74 = vcvt.s32.f32 %v58
  %v75 = vcvt.s32.f32 %v59
  %v76 = vcvt.s32.f32 %v60
  %v77 = vcvt.s32.f32 %v61
  %v78 = vcvt.s32.f32 %v62
  %v79 = vcvt.s32.f32 %v63
  %v80 = vcvt.s32.f32 %v64
  %v81 = vcvt.s32.f32 %v65
  %v82 = vcvt.s32.f32 %v66
  %v83 = vcvt.s32.f32 %v67
  %v84 = vlaneseq
  %v85 = vshrl.u32 %v84, 7
  %v86 = vsub.s32 0, %v85
  %v87 = vrot.slane %v14, %v86
  %vm88 = vcmp.eq.s32.totalorder %v16, %v87
  %vm89 = vcmp.eq.s32.totalorder %v17, %v87
  %vm90 = vcmp.eq.s32.totalorder %v18, %v87
  %vm91 = vcmp.eq.s32.totalorder %v19, %v87
  %vm92 = vcmp.eq.s32.totalorder %v20, %v87
  %vm93 = vcmp.eq.s32.totalorder %v21, %v87
  %vm94 = vcmp.eq.s32.totalorder %v22, %v87
  %vm95 = vcmp.eq.s32.totalorder %v23, %v87
  %vm96 = vcmp.eq.s32.totalorder %v24, %v87
  %vm97 = vcmp.eq.s32.totalorder %v25, %v87
  %vm98 = vcmp.eq.s32.totalorder %v26, %v87
  %vm99 = vcmp.eq.s32.totalorder %v27, %v87
  %vm100 = vcmp.eq.s32.totalorder %v28, %v87
  %vm101 = vcmp.eq.s32.totalorder %v29, %v87
  %vm102 = vcmp.eq.s32.totalorder %v30, %v87
  %vm103 = vcmp.eq.s32.totalorder %v31, %v87
  %v104 = vsel %vm88, 1, 0
  %v105 = vsel %vm89, 1, 0
  %v106 = vsel %vm90, 1, 0
  %v107 = vsel %vm91, 1, 0
  %v108 = vsel %vm92, 1, 0
  %v109 = vsel %vm93, 1, 0
  %v110 = vsel %vm94, 1, 0
  %v111 = vsel %vm95, 1, 0
  %v112 = vsel %vm96, 1, 0
  %v113 = vsel %vm97, 1, 0
  %v114 = vsel %vm98, 1, 0
  %v115 = vsel %vm99, 1, 0
  %v116 = vsel %vm100, 1, 0
  %v117 = vsel %vm101, 1, 0
  %v118 = vsel %vm102, 1, 0
  %v119 = vsel %vm103, 1, 0
  %v120 = vcvt.s32.f32 %v104
  %v121 = vcvt.s32.f32 %v105
  %v122 = vcvt.s32.f32 %v106
  %v123 = vcvt.s32.f32 %v107
  %v124 = vcvt.s32.f32 %v108
  %v125 = vcvt.s32.f32 %v109
  %v126 = vcvt.s32.f32 %v110
  %v127 = vcvt.s32.f32 %v111
  %v128 = vcvt.s32.f32 %v112
  %v129 = vcvt.s32.f32 %v113
  %v130 = vcvt.s32.f32 %v114
  %v131 = vcvt.s32.f32 %v115
  %v132 = vcvt.s32.f32 %v116
  %v133 = vcvt.s32.f32 %v117
  %v134 = vcvt.s32.f32 %v118
  %v135 = vcvt.s32.f32 %v119
  %v136 = vsub.f32 %v68, %v120
  %v137 = vsub.f32 %v69, %v121
  %v138 = vsub.f32 %v70, %v122
  %v139 = vsub.f32 %v71, %v123
  %v140 = vsub.f32 %v72, %v124
  %v141 = vsub.f32 %v73, %v125
  %v142 = vsub.f32 %v74, %v126
  %v143 = vsub.f32 %v75, %v127
  %v144 = vsub.f32 %v76, %v128
  %v145 = vsub.f32 %v77, %v129
  %v146 = vsub.f32 %v78, %v130
  %v147 = vsub.f32 %v79, %v131
  %v148 = vsub.f32 %v80, %v132
  %v149 = vsub.f32 %v81, %v133
  %v150 = vsub.f32 %v82, %v134
  %v151 = vsub.f32 %v83, %v135
  %v152 = vpack.c.bf16 %v137, %v136
  %v153 = vpack.c.bf16 %v139, %v138
  %v154 = vpack.c.bf16 %v141, %v140
  %v155 = vpack.c.bf16 %v143, %v142
  %v156 = vpack.c.bf16 %v145, %v144
  %v157 = vpack.c.bf16 %v147, %v146
  %v158 = vpack.c.bf16 %v149, %v148
  %v159 = vpack.c.bf16 %v151, %v150
  %v160 = vld [vmem:[%s1] sm:$0xf]
  %v161 = vld [vmem:[%s1 + $0x4] sm:$0xf]
  %v162 = vld [vmem:[%s1 + $0x8] sm:$0xf]
  %v163 = vld [vmem:[%s1 + $0xc] sm:$0xf]
  %v164 = vld [vmem:[%s1 + $0x10] sm:$0xf]
  %v165 = vld [vmem:[%s1 + $0x14] sm:$0xf]
  %v166 = vld [vmem:[%s1 + $0x18] sm:$0xf]
  %v167 = vld [vmem:[%s1 + $0x1c] sm:$0xf]
  %v168 = vld [vmem:[%s1 + $0x20] sm:$0xf]
  %v169 = vld [vmem:[%s1 + $0x24] sm:$0xf]
  %v170 = vld [vmem:[%s1 + $0x28] sm:$0xf]
  %v171 = vld [vmem:[%s1 + $0x2c] sm:$0xf]
  %v172 = vld [vmem:[%s1 + $0x30] sm:$0xf]
  %v173 = vld [vmem:[%s1 + $0x34] sm:$0xf]
  %v174 = vld [vmem:[%s1 + $0x38] sm:$0xf]
  %v175 = vld [vmem:[%s1 + $0x3c] sm:$0xf]
  %s176 = scalar_lea.vmem %s1, 128
  %v177 = vld [vmem:[%s176] sm:$0xf]
  %v178 = vld [vmem:[%s176 + $0x4] sm:$0xf]
  %v179 = vld [vmem:[%s176 + $0x8] sm:$0xf]
  %v180 = vld [vmem:[%s176 + $0xc] sm:$0xf]
  %v181 = vld [vmem:[%s176 + $0x10] sm:$0xf]
  %v182 = vld [vmem:[%s176 + $0x14] sm:$0xf]
  %v183 = vld [vmem:[%s176 + $0x18] sm:$0xf]
  %v184 = vld [vmem:[%s176 + $0x1c] sm:$0xf]
  %v185 = vld [vmem:[%s176 + $0x20] sm:$0xf]
  %v186 = vld [vmem:[%s176 + $0x24] sm:$0xf]
  %v187 = vld [vmem:[%s176 + $0x28] sm:$0xf]
  %v188 = vld [vmem:[%s176 + $0x2c] sm:$0xf]
  %v189 = vld [vmem:[%s176 + $0x30] sm:$0xf]
  %v190 = vld [vmem:[%s176 + $0x34] sm:$0xf]
  %v191 = vld [vmem:[%s176 + $0x38] sm:$0xf]
  %v192 = vld [vmem:[%s176 + $0x3c] sm:$0xf]
  %v209 = vunpack.c.l.b16 %v177
  %v210 = vunpack.c.l.b16 %v178
  %v211 = vunpack.c.l.b16 %v179
  %v212 = vunpack.c.l.b16 %v180
  %v213 = vunpack.c.l.b16 %v181
  %v214 = vunpack.c.l.b16 %v182
  %v215 = vunpack.c.l.b16 %v183
  %v216 = vunpack.c.l.b16 %v184
  %v217 = vunpack.c.l.b16 %v185
  %v218 = vunpack.c.l.b16 %v186
  %v219 = vunpack.c.l.b16 %v187
  %v220 = vunpack.c.l.b16 %v188
  %v221 = vunpack.c.l.b16 %v189
  %v222 = vunpack.c.l.b16 %v190
  %v223 = vunpack.c.l.b16 %v191
  %v224 = vunpack.c.l.b16 %v192
  %v225 = vpack.c.b16 %v210, %v209
  %v226 = vpack.c.b16 %v212, %v211
  %v227 = vpack.c.b16 %v214, %v213
  %v228 = vpack.c.b16 %v216, %v215
  %v229 = vpack.c.b16 %v218, %v217
  %v230 = vpack.c.b16 %v220, %v219
  %v231 = vpack.c.b16 %v222, %v221
  %v232 = vpack.c.b16 %v224, %v223
  %241 = vmatprep.subr.bf16.mxu0 0
  %242 = vmatpush1.bf16.msra.mxu0 %v152
  %243 = vmatprep.subr.bf16.mxu0 0
  %244 = vmatpush1.bf16.msra.mxu0 %v153
  %245 = vmatprep.subr.bf16.mxu0 0
  %246 = vmatpush1.bf16.msra.mxu0 %v154
  %247 = vmatprep.subr.bf16.mxu0 0
  %248 = vmatpush1.bf16.msra.mxu0 %v155
  %249 = vmatprep.subr.bf16.mxu0 0
  %250 = vmatpush1.bf16.msra.mxu0 %v156
  %251 = vmatprep.subr.bf16.mxu0 0
  %252 = vmatpush1.bf16.msra.mxu0 %v157
  %253 = vmatprep.subr.bf16.mxu0 0
  %254 = vmatpush1.bf16.msra.mxu0 %v158
  %255 = vmatprep.subr.bf16.mxu0 0
  %256 = vmatpush1.bf16.msra.mxu0 %v159
  %257 = vmatprep.subr.bf16.mxu0 0
  %258 = vmatpush1.bf16.msra.mxu0 0
  %259 = vmatprep.subr.bf16.mxu0 0
  %260 = vmatpush1.bf16.msra.mxu0 0
  %261 = vmatprep.subr.bf16.mxu0 0
  %262 = vmatpush1.bf16.msra.mxu0 0
  %263 = vmatprep.subr.bf16.mxu0 0
  %264 = vmatpush1.bf16.msra.mxu0 0
  %265 = vmatprep.subr.bf16.mxu0 0
  %266 = vmatpush1.bf16.msra.mxu0 0
  %267 = vmatprep.subr.bf16.mxu0 0
  %268 = vmatpush1.bf16.msra.mxu0 0
  %269 = vmatprep.subr.bf16.mxu0 0
  %270 = vmatpush1.bf16.msra.mxu0 0
  %271 = vmatprep.subr.bf16.mxu0 0
  %272 = vmatpush1.bf16.msra.mxu0 0
  %273 = vmatprep.mubr.bf16.mxu0 0
  %274 = vmatmul.mubr.bf16.gmra.mrb[0].mxu0 %v225
  %v275 = vpop.f32.mrb[0].mxu0
  %v276 = vadd.f32 0.0, %v275
  %v277 = vpop.f32.mrb[0].mxu0
  %v278 = vpop.f32.mrb[0].mxu0
  %v279 = vadd.f32 0.0, %v278
  %v280 = vpop.f32.mrb[0].mxu0
  %281 = vmatprep.mubr.bf16.mxu0 0
  %282 = vmatmul.mubr.bf16.gmra.mrb[0].mxu0 %v226
  %v283 = vpop.f32.mrb[0].mxu0
  %v284 = vadd.f32 0.0, %v283
  %v285 = vpop.f32.mrb[0].mxu0
  %v286 = vpop.f32.mrb[0].mxu0
  %v287 = vadd.f32 0.0, %v286
  %v288 = vpop.f32.mrb[0].mxu0
  %289 = vmatprep.mubr.bf16.mxu0 0
  %290 = vmatmul.mubr.bf16.gmra.mrb[0].mxu0 %v227
  %v291 = vpop.f32.mrb[0].mxu0
  %v292 = vadd.f32 0.0, %v291
  %v293 = vpop.f32.mrb[0].mxu0
  %v294 = vpop.f32.mrb[0].mxu0
  %v295 = vadd.f32 0.0, %v294
  %v296 = vpop.f32.mrb[0].mxu0
  %297 = vmatprep.mubr.bf16.mxu0 0
  %298 = vmatmul.mubr.bf16.gmra.mrb[0].mxu0 %v228
  %v299 = vpop.f32.mrb[0].mxu0
  %v300 = vadd.f32 0.0, %v299
  %v301 = vpop.f32.mrb[0].mxu0
  %v302 = vpop.f32.mrb[0].mxu0
  %v303 = vadd.f32 0.0, %v302
  %v304 = vpop.f32.mrb[0].mxu0
  %305 = vmatprep.mubr.bf16.mxu0 0
  %306 = vmatmul.mubr.bf16.gmra.mrb[0].mxu0 %v229
  %v307 = vpop.f32.mrb[0].mxu0
  %v308 = vadd.f32 0.0, %v307
  %v309 = vpop.f32.mrb[0].mxu0
  %v310 = vpop.f32.mrb[0].mxu0
  %v311 = vadd.f32 0.0, %v310
  %v312 = vpop.f32.mrb[0].mxu0
  %313 = vmatprep.mubr.bf16.mxu0 0
  %314 = vmatmul.mubr.bf16.gmra.mrb[0].mxu0 %v230
  %v315 = vpop.f32.mrb[0].mxu0
  %v316 = vadd.f32 0.0, %v315
  %v317 = vpop.f32.mrb[0].mxu0
  %v318 = vpop.f32.mrb[0].mxu0
  %v319 = vadd.f32 0.0, %v318
  %v320 = vpop.f32.mrb[0].mxu0
  %321 = vmatprep.mubr.bf16.mxu0 0
  %322 = vmatmul.mubr.bf16.gmra.mrb[0].mxu0 %v231
  %v323 = vpop.f32.mrb[0].mxu0
  %v324 = vadd.f32 0.0, %v323
  %v325 = vpop.f32.mrb[0].mxu0
  %v326 = vpop.f32.mrb[0].mxu0
  %v327 = vadd.f32 0.0, %v326
  %v328 = vpop.f32.mrb[0].mxu0
  %329 = vmatprep.mubr.bf16.mxu0 0
  %330 = vmatmul.mubr.bf16.gmra.mrb[0].mxu0 %v232
  %v331 = vpop.f32.mrb[0].mxu0
  %v332 = vadd.f32 0.0, %v331
  %v333 = vpop.f32.mrb[0].mxu0
  %v334 = vpop.f32.mrb[0].mxu0
  %v335 = vadd.f32 0.0, %v334
  %v336 = vpop.f32.mrb[0].mxu0
  %337 = vdwg.mxu0
  %v354 = vunpack.c.l.b16 %v160
  %v355 = vunpack.c.l.b16 %v161
  %v356 = vunpack.c.l.b16 %v162
  %v357 = vunpack.c.l.b16 %v163
  %v358 = vunpack.c.l.b16 %v164
  %v359 = vunpack.c.l.b16 %v165
  %v360 = vunpack.c.l.b16 %v166
  %v361 = vunpack.c.l.b16 %v167
  %v362 = vunpack.c.l.b16 %v168
  %v363 = vunpack.c.l.b16 %v169
  %v364 = vunpack.c.l.b16 %v170
  %v365 = vunpack.c.l.b16 %v171
  %v366 = vunpack.c.l.b16 %v172
  %v367 = vunpack.c.l.b16 %v173
  %v368 = vunpack.c.l.b16 %v174
  %v369 = vunpack.c.l.b16 %v175
  %v370 = vpack.c.b16 %v355, %v354
  %v371 = vpack.c.b16 %v357, %v356
  %v372 = vpack.c.b16 %v359, %v358
  %v373 = vpack.c.b16 %v361, %v360
  %v374 = vpack.c.b16 %v363, %v362
  %v375 = vpack.c.b16 %v365, %v364
  %v376 = vpack.c.b16 %v367, %v366
  %v377 = vpack.c.b16 %v369, %v368
  %386 = vmatprep.subr.bf16.mxu0 0
  %387 = vmatpush1.bf16.msra.mxu0 %v152
  %388 = vmatprep.subr.bf16.mxu0 0
  %389 = vmatpush1.bf16.msra.mxu0 %v153
  %390 = vmatprep.subr.bf16.mxu0 0
  %391 = vmatpush1.bf16.msra.mxu0 %v154
  %392 = vmatprep.subr.bf16.mxu0 0
  %393 = vmatpush1.bf16.msra.mxu0 %v155
  %394 = vmatprep.subr.bf16.mxu0 0
  %395 = vmatpush1.bf16.msra.mxu0 %v156
  %396 = vmatprep.subr.bf16.mxu0 0
  %397 = vmatpush1.bf16.msra.mxu0 %v157
  %398 = vmatprep.subr.bf16.mxu0 0
  %399 = vmatpush1.bf16.msra.mxu0 %v158
  %400 = vmatprep.subr.bf16.mxu0 0
  %401 = vmatpush1.bf16.msra.mxu0 %v159
  %402 = vmatprep.subr.bf16.mxu0 0
  %403 = vmatpush1.bf16.msra.mxu0 0
  %404 = vmatprep.subr.bf16.mxu0 0
  %405 = vmatpush1.bf16.msra.mxu0 0
  %406 = vmatprep.subr.bf16.mxu0 0
  %407 = vmatpush1.bf16.msra.mxu0 0
  %408 = vmatprep.subr.bf16.mxu0 0
  %409 = vmatpush1.bf16.msra.mxu0 0
  %410 = vmatprep.subr.bf16.mxu0 0
  %411 = vmatpush1.bf16.msra.mxu0 0
  %412 = vmatprep.subr.bf16.mxu0 0
  %413 = vmatpush1.bf16.msra.mxu0 0
  %414 = vmatprep.subr.bf16.mxu0 0
  %415 = vmatpush1.bf16.msra.mxu0 0
  %416 = vmatprep.subr.bf16.mxu0 0
  %417 = vmatpush1.bf16.msra.mxu0 0
  %418 = vmatprep.mubr.bf16.mxu0 0
  %419 = vmatmul.mubr.bf16.gmra.mrb[0].mxu0 %v370
  %v420 = vpop.f32.mrb[0].mxu0
  %v421 = vadd.f32 %v276, %v420
  %v422 = vpop.f32.mrb[0].mxu0
  %v423 = vpop.f32.mrb[0].mxu0
  %v424 = vadd.f32 %v279, %v423
  %v425 = vpop.f32.mrb[0].mxu0
  %426 = vmatprep.mubr.bf16.mxu0 0
  %427 = vmatmul.mubr.bf16.gmra.mrb[0].mxu0 %v371
  %v428 = vpop.f32.mrb[0].mxu0
  %v429 = vadd.f32 %v284, %v428
  %v430 = vpop.f32.mrb[0].mxu0
  %v431 = vpop.f32.mrb[0].mxu0
  %v432 = vadd.f32 %v287, %v431
  %v433 = vpop.f32.mrb[0].mxu0
  %434 = vmatprep.mubr.bf16.mxu0 0
  %435 = vmatmul.mubr.bf16.gmra.mrb[0].mxu0 %v372
  %v436 = vpop.f32.mrb[0].mxu0
  %v437 = vadd.f32 %v292, %v436
  %v438 = vpop.f32.mrb[0].mxu0
  %v439 = vpop.f32.mrb[0].mxu0
  %v440 = vadd.f32 %v295, %v439
  %v441 = vpop.f32.mrb[0].mxu0
  %442 = vmatprep.mubr.bf16.mxu0 0
  %443 = vmatmul.mubr.bf16.gmra.mrb[0].mxu0 %v373
  %v444 = vpop.f32.mrb[0].mxu0
  %v445 = vadd.f32 %v300, %v444
  %v446 = vpop.f32.mrb[0].mxu0
  %v447 = vpop.f32.mrb[0].mxu0
  %v448 = vadd.f32 %v303, %v447
  %v449 = vpop.f32.mrb[0].mxu0
  %450 = vmatprep.mubr.bf16.mxu0 0
  %451 = vmatmul.mubr.bf16.gmra.mrb[0].mxu0 %v374
  %v452 = vpop.f32.mrb[0].mxu0
  %v453 = vadd.f32 %v308, %v452
  %v454 = vpop.f32.mrb[0].mxu0
  %v455 = vpop.f32.mrb[0].mxu0
  %v456 = vadd.f32 %v311, %v455
  %v457 = vpop.f32.mrb[0].mxu0
  %458 = vmatprep.mubr.bf16.mxu0 0
  %459 = vmatmul.mubr.bf16.gmra.mrb[0].mxu0 %v375
  %v460 = vpop.f32.mrb[0].mxu0
  %v461 = vadd.f32 %v316, %v460
  %v462 = vpop.f32.mrb[0].mxu0
  %v463 = vpop.f32.mrb[0].mxu0
  %v464 = vadd.f32 %v319, %v463
  %v465 = vpop.f32.mrb[0].mxu0
  %466 = vmatprep.mubr.bf16.mxu0 0
  %467 = vmatmul.mubr.bf16.gmra.mrb[0].mxu0 %v376
  %v468 = vpop.f32.mrb[0].mxu0
  %v469 = vadd.f32 %v324, %v468
  %v470 = vpop.f32.mrb[0].mxu0
  %v471 = vpop.f32.mrb[0].mxu0
  %v472 = vadd.f32 %v327, %v471
  %v473 = vpop.f32.mrb[0].mxu0
  %474 = vmatprep.mubr.bf16.mxu0 0
  %475 = vmatmul.mubr.bf16.gmra.mrb[0].mxu0 %v377
  %v476 = vpop.f32.mrb[0].mxu0
  %v477 = vadd.f32 %v332, %v476
  %v478 = vpop.f32.mrb[0].mxu0
  %v479 = vpop.f32.mrb[0].mxu0
  %v480 = vadd.f32 %v335, %v479
  %v481 = vpop.f32.mrb[0].mxu0
  %482 = vdwg.mxu0
  %v483 = vand.u32 2147483647, %v421
  %v484 = vand.u32 2147483647, %v424
  %v485 = vand.u32 2147483647, %v429
  %v486 = vand.u32 2147483647, %v432
  %v487 = vand.u32 2147483647, %v437
  %v488 = vand.u32 2147483647, %v440
  %v489 = vand.u32 2147483647, %v445
  %v490 = vand.u32 2147483647, %v448
  %v491 = vand.u32 2147483647, %v453
  %v492 = vand.u32 2147483647, %v456
  %v493 = vand.u32 2147483647, %v461
  %v494 = vand.u32 2147483647, %v464
  %v495 = vand.u32 2147483647, %v469
  %v496 = vand.u32 2147483647, %v472
  %v497 = vand.u32 2147483647, %v477
  %v498 = vand.u32 2147483647, %v480
  %v499 = vadd.f32 %v483, %v484
  %v500 = vadd.f32 %v499, %v485
  %v501 = vadd.f32 %v500, %v486
  %v502 = vadd.f32 %v501, %v487
  %v503 = vadd.f32 %v502, %v488
  %v504 = vadd.f32 %v503, %v489
  %v505 = vadd.f32 %v504, %v490
  %v506 = vadd.f32 %v505, %v491
  %v507 = vadd.f32 %v506, %v492
  %v508 = vadd.f32 %v507, %v493
  %v509 = vadd.f32 %v508, %v494
  %v510 = vadd.f32 %v509, %v495
  %v511 = vadd.f32 %v510, %v496
  %v512 = vadd.f32 %v511, %v497
  %v513 = vadd.f32 %v512, %v498
  %v514 = vrot.slane %v513, 4
  %v515 = vadd.f32 %v513, %v514
  %v516 = vrot.slane %v515, 2
  %v517 = vadd.f32 %v515, %v516
  %v518 = vrot.slane %v517, 1
  %v519 = vadd.f32 %v517, %v518
  %v520 = vld [vmem:[%s1 + $0x40] sm:$0xf]
  %v521 = vld [vmem:[%s1 + $0x44] sm:$0xf]
  %v522 = vld [vmem:[%s1 + $0x48] sm:$0xf]
  %v523 = vld [vmem:[%s1 + $0x4c] sm:$0xf]
  %v524 = vld [vmem:[%s1 + $0x50] sm:$0xf]
  %v525 = vld [vmem:[%s1 + $0x54] sm:$0xf]
  %v526 = vld [vmem:[%s1 + $0x58] sm:$0xf]
  %v527 = vld [vmem:[%s1 + $0x5c] sm:$0xf]
  %v528 = vld [vmem:[%s1 + $0x60] sm:$0xf]
  %v529 = vld [vmem:[%s1 + $0x64] sm:$0xf]
  %v530 = vld [vmem:[%s1 + $0x68] sm:$0xf]
  %v531 = vld [vmem:[%s1 + $0x6c] sm:$0xf]
  %v532 = vld [vmem:[%s1 + $0x70] sm:$0xf]
  %v533 = vld [vmem:[%s1 + $0x74] sm:$0xf]
  %v534 = vld [vmem:[%s1 + $0x78] sm:$0xf]
  %v535 = vld [vmem:[%s1 + $0x7c] sm:$0xf]
  %v536 = vld [vmem:[%s176 + $0x40] sm:$0xf]
  %v537 = vld [vmem:[%s176 + $0x44] sm:$0xf]
  %v538 = vld [vmem:[%s176 + $0x48] sm:$0xf]
  %v539 = vld [vmem:[%s176 + $0x4c] sm:$0xf]
  %v540 = vld [vmem:[%s176 + $0x50] sm:$0xf]
  %v541 = vld [vmem:[%s176 + $0x54] sm:$0xf]
  %v542 = vld [vmem:[%s176 + $0x58] sm:$0xf]
  %v543 = vld [vmem:[%s176 + $0x5c] sm:$0xf]
  %v544 = vld [vmem:[%s176 + $0x60] sm:$0xf]
  %v545 = vld [vmem:[%s176 + $0x64] sm:$0xf]
  %v546 = vld [vmem:[%s176 + $0x68] sm:$0xf]
  %v547 = vld [vmem:[%s176 + $0x6c] sm:$0xf]
  %v548 = vld [vmem:[%s176 + $0x70] sm:$0xf]
  %v549 = vld [vmem:[%s176 + $0x74] sm:$0xf]
  %v550 = vld [vmem:[%s176 + $0x78] sm:$0xf]
  %v551 = vld [vmem:[%s176 + $0x7c] sm:$0xf]
  %v568 = vunpack.c.l.b16 %v536
  %v569 = vunpack.c.l.b16 %v537
  %v570 = vunpack.c.l.b16 %v538
  %v571 = vunpack.c.l.b16 %v539
  %v572 = vunpack.c.l.b16 %v540
  %v573 = vunpack.c.l.b16 %v541
  %v574 = vunpack.c.l.b16 %v542
  %v575 = vunpack.c.l.b16 %v543
  %v576 = vunpack.c.l.b16 %v544
  %v577 = vunpack.c.l.b16 %v545
  %v578 = vunpack.c.l.b16 %v546
  %v579 = vunpack.c.l.b16 %v547
  %v580 = vunpack.c.l.b16 %v548
  %v581 = vunpack.c.l.b16 %v549
  %v582 = vunpack.c.l.b16 %v550
  %v583 = vunpack.c.l.b16 %v551
  %v584 = vpack.c.b16 %v569, %v568
  %v585 = vpack.c.b16 %v571, %v570
  %v586 = vpack.c.b16 %v573, %v572
  %v587 = vpack.c.b16 %v575, %v574
  %v588 = vpack.c.b16 %v577, %v576
  %v589 = vpack.c.b16 %v579, %v578
  %v590 = vpack.c.b16 %v581, %v580
  %v591 = vpack.c.b16 %v583, %v582
  %600 = vmatprep.subr.bf16.mxu0 0
  %601 = vmatpush1.bf16.msra.mxu0 %v152
  %602 = vmatprep.subr.bf16.mxu0 0
  %603 = vmatpush1.bf16.msra.mxu0 %v153
  %604 = vmatprep.subr.bf16.mxu0 0
  %605 = vmatpush1.bf16.msra.mxu0 %v154
  %606 = vmatprep.subr.bf16.mxu0 0
  %607 = vmatpush1.bf16.msra.mxu0 %v155
  %608 = vmatprep.subr.bf16.mxu0 0
  %609 = vmatpush1.bf16.msra.mxu0 %v156
  %610 = vmatprep.subr.bf16.mxu0 0
  %611 = vmatpush1.bf16.msra.mxu0 %v157
  %612 = vmatprep.subr.bf16.mxu0 0
  %613 = vmatpush1.bf16.msra.mxu0 %v158
  %614 = vmatprep.subr.bf16.mxu0 0
  %615 = vmatpush1.bf16.msra.mxu0 %v159
  %616 = vmatprep.subr.bf16.mxu0 0
  %617 = vmatpush1.bf16.msra.mxu0 0
  %618 = vmatprep.subr.bf16.mxu0 0
  %619 = vmatpush1.bf16.msra.mxu0 0
  %620 = vmatprep.subr.bf16.mxu0 0
  %621 = vmatpush1.bf16.msra.mxu0 0
  %622 = vmatprep.subr.bf16.mxu0 0
  %623 = vmatpush1.bf16.msra.mxu0 0
  %624 = vmatprep.subr.bf16.mxu0 0
  %625 = vmatpush1.bf16.msra.mxu0 0
  %626 = vmatprep.subr.bf16.mxu0 0
  %627 = vmatpush1.bf16.msra.mxu0 0
  %628 = vmatprep.subr.bf16.mxu0 0
  %629 = vmatpush1.bf16.msra.mxu0 0
  %630 = vmatprep.subr.bf16.mxu0 0
  %631 = vmatpush1.bf16.msra.mxu0 0
  %632 = vmatprep.mubr.bf16.mxu0 0
  %633 = vmatmul.mubr.bf16.gmra.mrb[0].mxu0 %v584
  %v634 = vpop.f32.mrb[0].mxu0
  %v635 = vadd.f32 0.0, %v634
  %v636 = vpop.f32.mrb[0].mxu0
  %v637 = vpop.f32.mrb[0].mxu0
  %v638 = vadd.f32 0.0, %v637
  %v639 = vpop.f32.mrb[0].mxu0
  %640 = vmatprep.mubr.bf16.mxu0 0
  %641 = vmatmul.mubr.bf16.gmra.mrb[0].mxu0 %v585
  %v642 = vpop.f32.mrb[0].mxu0
  %v643 = vadd.f32 0.0, %v642
  %v644 = vpop.f32.mrb[0].mxu0
  %v645 = vpop.f32.mrb[0].mxu0
  %v646 = vadd.f32 0.0, %v645
  %v647 = vpop.f32.mrb[0].mxu0
  %648 = vmatprep.mubr.bf16.mxu0 0
  %649 = vmatmul.mubr.bf16.gmra.mrb[0].mxu0 %v586
  %v650 = vpop.f32.mrb[0].mxu0
  %v651 = vadd.f32 0.0, %v650
  %v652 = vpop.f32.mrb[0].mxu0
  %v653 = vpop.f32.mrb[0].mxu0
  %v654 = vadd.f32 0.0, %v653
  %v655 = vpop.f32.mrb[0].mxu0
  %656 = vmatprep.mubr.bf16.mxu0 0
  %657 = vmatmul.mubr.bf16.gmra.mrb[0].mxu0 %v587
  %v658 = vpop.f32.mrb[0].mxu0
  %v659 = vadd.f32 0.0, %v658
  %v660 = vpop.f32.mrb[0].mxu0
  %v661 = vpop.f32.mrb[0].mxu0
  %v662 = vadd.f32 0.0, %v661
  %v663 = vpop.f32.mrb[0].mxu0
  %664 = vmatprep.mubr.bf16.mxu0 0
  %665 = vmatmul.mubr.bf16.gmra.mrb[0].mxu0 %v588
  %v666 = vpop.f32.mrb[0].mxu0
  %v667 = vadd.f32 0.0, %v666
  %v668 = vpop.f32.mrb[0].mxu0
  %v669 = vpop.f32.mrb[0].mxu0
  %v670 = vadd.f32 0.0, %v669
  %v671 = vpop.f32.mrb[0].mxu0
  %672 = vmatprep.mubr.bf16.mxu0 0
  %673 = vmatmul.mubr.bf16.gmra.mrb[0].mxu0 %v589
  %v674 = vpop.f32.mrb[0].mxu0
  %v675 = vadd.f32 0.0, %v674
  %v676 = vpop.f32.mrb[0].mxu0
  %v677 = vpop.f32.mrb[0].mxu0
  %v678 = vadd.f32 0.0, %v677
  %v679 = vpop.f32.mrb[0].mxu0
  %680 = vmatprep.mubr.bf16.mxu0 0
  %681 = vmatmul.mubr.bf16.gmra.mrb[0].mxu0 %v590
  %v682 = vpop.f32.mrb[0].mxu0
  %v683 = vadd.f32 0.0, %v682
  %v684 = vpop.f32.mrb[0].mxu0
  %v685 = vpop.f32.mrb[0].mxu0
  %v686 = vadd.f32 0.0, %v685
  %v687 = vpop.f32.mrb[0].mxu0
  %688 = vmatprep.mubr.bf16.mxu0 0
  %689 = vmatmul.mubr.bf16.gmra.mrb[0].mxu0 %v591
  %v690 = vpop.f32.mrb[0].mxu0
  %v691 = vadd.f32 0.0, %v690
  %v692 = vpop.f32.mrb[0].mxu0
  %v693 = vpop.f32.mrb[0].mxu0
  %v694 = vadd.f32 0.0, %v693
  %v695 = vpop.f32.mrb[0].mxu0
  %696 = vdwg.mxu0
  %v713 = vunpack.c.l.b16 %v520
  %v714 = vunpack.c.l.b16 %v521
  %v715 = vunpack.c.l.b16 %v522
  %v716 = vunpack.c.l.b16 %v523
  %v717 = vunpack.c.l.b16 %v524
  %v718 = vunpack.c.l.b16 %v525
  %v719 = vunpack.c.l.b16 %v526
  %v720 = vunpack.c.l.b16 %v527
  %v721 = vunpack.c.l.b16 %v528
  %v722 = vunpack.c.l.b16 %v529
  %v723 = vunpack.c.l.b16 %v530
  %v724 = vunpack.c.l.b16 %v531
  %v725 = vunpack.c.l.b16 %v532
  %v726 = vunpack.c.l.b16 %v533
  %v727 = vunpack.c.l.b16 %v534
  %v728 = vunpack.c.l.b16 %v535
  %v729 = vpack.c.b16 %v714, %v713
  %v730 = vpack.c.b16 %v716, %v715
  %v731 = vpack.c.b16 %v718, %v717
  %v732 = vpack.c.b16 %v720, %v719
  %v733 = vpack.c.b16 %v722, %v721
  %v734 = vpack.c.b16 %v724, %v723
  %v735 = vpack.c.b16 %v726, %v725
  %v736 = vpack.c.b16 %v728, %v727
  %745 = vmatprep.subr.bf16.mxu0 0
  %746 = vmatpush1.bf16.msra.mxu0 %v152
  %747 = vmatprep.subr.bf16.mxu0 0
  %748 = vmatpush1.bf16.msra.mxu0 %v153
  %749 = vmatprep.subr.bf16.mxu0 0
  %750 = vmatpush1.bf16.msra.mxu0 %v154
  %751 = vmatprep.subr.bf16.mxu0 0
  %752 = vmatpush1.bf16.msra.mxu0 %v155
  %753 = vmatprep.subr.bf16.mxu0 0
  %754 = vmatpush1.bf16.msra.mxu0 %v156
  %755 = vmatprep.subr.bf16.mxu0 0
  %756 = vmatpush1.bf16.msra.mxu0 %v157
  %757 = vmatprep.subr.bf16.mxu0 0
  %758 = vmatpush1.bf16.msra.mxu0 %v158
  %759 = vmatprep.subr.bf16.mxu0 0
  %760 = vmatpush1.bf16.msra.mxu0 %v159
  %761 = vmatprep.subr.bf16.mxu0 0
  %762 = vmatpush1.bf16.msra.mxu0 0
  %763 = vmatprep.subr.bf16.mxu0 0
  %764 = vmatpush1.bf16.msra.mxu0 0
  %765 = vmatprep.subr.bf16.mxu0 0
  %766 = vmatpush1.bf16.msra.mxu0 0
  %767 = vmatprep.subr.bf16.mxu0 0
  %768 = vmatpush1.bf16.msra.mxu0 0
  %769 = vmatprep.subr.bf16.mxu0 0
  %770 = vmatpush1.bf16.msra.mxu0 0
  %771 = vmatprep.subr.bf16.mxu0 0
  %772 = vmatpush1.bf16.msra.mxu0 0
  %773 = vmatprep.subr.bf16.mxu0 0
  %774 = vmatpush1.bf16.msra.mxu0 0
  %775 = vmatprep.subr.bf16.mxu0 0
  %776 = vmatpush1.bf16.msra.mxu0 0
  %777 = vmatprep.mubr.bf16.mxu0 0
  %778 = vmatmul.mubr.bf16.gmra.mrb[0].mxu0 %v729
  %v779 = vpop.f32.mrb[0].mxu0
  %v780 = vadd.f32 %v635, %v779
  %v781 = vpop.f32.mrb[0].mxu0
  %v782 = vpop.f32.mrb[0].mxu0
  %v783 = vadd.f32 %v638, %v782
  %v784 = vpop.f32.mrb[0].mxu0
  %785 = vmatprep.mubr.bf16.mxu0 0
  %786 = vmatmul.mubr.bf16.gmra.mrb[0].mxu0 %v730
  %v787 = vpop.f32.mrb[0].mxu0
  %v788 = vadd.f32 %v643, %v787
  %v789 = vpop.f32.mrb[0].mxu0
  %v790 = vpop.f32.mrb[0].mxu0
  %v791 = vadd.f32 %v646, %v790
  %v792 = vpop.f32.mrb[0].mxu0
  %793 = vmatprep.mubr.bf16.mxu0 0
  %794 = vmatmul.mubr.bf16.gmra.mrb[0].mxu0 %v731
  %v795 = vpop.f32.mrb[0].mxu0
  %v796 = vadd.f32 %v651, %v795
  %v797 = vpop.f32.mrb[0].mxu0
  %v798 = vpop.f32.mrb[0].mxu0
  %v799 = vadd.f32 %v654, %v798
  %v800 = vpop.f32.mrb[0].mxu0
  %801 = vmatprep.mubr.bf16.mxu0 0
  %802 = vmatmul.mubr.bf16.gmra.mrb[0].mxu0 %v732
  %v803 = vpop.f32.mrb[0].mxu0
  %v804 = vadd.f32 %v659, %v803
  %v805 = vpop.f32.mrb[0].mxu0
  %v806 = vpop.f32.mrb[0].mxu0
  %v807 = vadd.f32 %v662, %v806
  %v808 = vpop.f32.mrb[0].mxu0
  %809 = vmatprep.mubr.bf16.mxu0 0
  %810 = vmatmul.mubr.bf16.gmra.mrb[0].mxu0 %v733
  %v811 = vpop.f32.mrb[0].mxu0
  %v812 = vadd.f32 %v667, %v811
  %v813 = vpop.f32.mrb[0].mxu0
  %v814 = vpop.f32.mrb[0].mxu0
  %v815 = vadd.f32 %v670, %v814
  %v816 = vpop.f32.mrb[0].mxu0
  %817 = vmatprep.mubr.bf16.mxu0 0
  %818 = vmatmul.mubr.bf16.gmra.mrb[0].mxu0 %v734
  %v819 = vpop.f32.mrb[0].mxu0
  %v820 = vadd.f32 %v675, %v819
  %v821 = vpop.f32.mrb[0].mxu0
  %v822 = vpop.f32.mrb[0].mxu0
  %v823 = vadd.f32 %v678, %v822
  %v824 = vpop.f32.mrb[0].mxu0
  %825 = vmatprep.mubr.bf16.mxu0 0
  %826 = vmatmul.mubr.bf16.gmra.mrb[0].mxu0 %v735
  %v827 = vpop.f32.mrb[0].mxu0
  %v828 = vadd.f32 %v683, %v827
  %v829 = vpop.f32.mrb[0].mxu0
  %v830 = vpop.f32.mrb[0].mxu0
  %v831 = vadd.f32 %v686, %v830
  %v832 = vpop.f32.mrb[0].mxu0
  %833 = vmatprep.mubr.bf16.mxu0 0
  %834 = vmatmul.mubr.bf16.gmra.mrb[0].mxu0 %v736
  %v835 = vpop.f32.mrb[0].mxu0
  %v836 = vadd.f32 %v691, %v835
  %v837 = vpop.f32.mrb[0].mxu0
  %v838 = vpop.f32.mrb[0].mxu0
  %v839 = vadd.f32 %v694, %v838
  %v840 = vpop.f32.mrb[0].mxu0
  %841 = vdwg.mxu0
  %v842 = vmul.f32 %v780, %v780
  %v843 = vmul.f32 %v783, %v783
  %v844 = vmul.f32 %v788, %v788
  %v845 = vmul.f32 %v791, %v791
  %v846 = vmul.f32 %v796, %v796
  %v847 = vmul.f32 %v799, %v799
  %v848 = vmul.f32 %v804, %v804
  %v849 = vmul.f32 %v807, %v807
  %v850 = vmul.f32 %v812, %v812
  %v851 = vmul.f32 %v815, %v815
  %v852 = vmul.f32 %v820, %v820
  %v853 = vmul.f32 %v823, %v823
  %v854 = vmul.f32 %v828, %v828
  %v855 = vmul.f32 %v831, %v831
  %v856 = vmul.f32 %v836, %v836
  %v857 = vmul.f32 %v839, %v839
  %v858 = vadd.f32 %v842, %v843
  %v859 = vadd.f32 %v858, %v844
  %v860 = vadd.f32 %v859, %v845
  %v861 = vadd.f32 %v860, %v846
  %v862 = vadd.f32 %v861, %v847
  %v863 = vadd.f32 %v862, %v848
  %v864 = vadd.f32 %v863, %v849
  %v865 = vadd.f32 %v864, %v850
  %v866 = vadd.f32 %v865, %v851
  %v867 = vadd.f32 %v866, %v852
  %v868 = vadd.f32 %v867, %v853
  %v869 = vadd.f32 %v868, %v854
  %v870 = vadd.f32 %v869, %v855
  %v871 = vadd.f32 %v870, %v856
  %v872 = vadd.f32 %v871, %v857
  %v873 = vrot.slane %v872, 4
  %v874 = vadd.f32 %v872, %v873
  %v875 = vrot.slane %v874, 2
  %v876 = vadd.f32 %v874, %v875
  %v877 = vrot.slane %v876, 1
  %v878 = vadd.f32 %v876, %v877
  %v879 = vrsqrt.pop %v878
  %v880 = vmul.f32 %v878, %v879
  %vm881 = vcmp.eq.f32.partialorder %v878, inf
  %v882 = vsel %vm881, %v878, %v880
  %vm883 = vcmp.eq.f32.partialorder %v878, 0.0
  %v884 = vand.u32 %v878, 2147483648
  %v885 = vsel %vm883, %v884, %v882
  %886 = vst [vmem:[%s2] sm:$0x1] %v885
  %887 = vst [vmem:[%s2 + $0x1] sm:$0x1] %v519
  // Predicated region
  $region10: #{_l2_forward_impl.1} parent=0 // pred_check
    _
  $region11: #{_l2_forward_impl.1} parent=0 // pred_check_branch
    %889 = sbr.rel (0) target = $region13
  $region12: #{_l2_forward_impl.1} parent=0 // pred_region
    _
  $region13: #{_l2_forward_impl.1} parent=0 // pred_fallthru
    _
  // Predicated region
  $region14: #{_l2_forward_impl.1} parent=0 // pred_check
    _
  $region15: #{_l2_forward_impl.1} parent=0 // pred_check_branch
    %891 = sbr.rel (0) target = $region17
  $region16: #{_l2_forward_impl.1} parent=0 // pred_region
    _
  $region17: #{_l2_forward_impl.1} parent=0 // pred_fallthru
    _

</llo_original>
